<compile_context>
chip_gen: v7x
topology: tpu7x:2x2x1
jax: 0.10.0
libtpu: 0.0.40
codegen_flags: <defaults>
</compile_context>

<pallas_src>
import functools

import jax
import jax.numpy as jnp
from jax.experimental import pallas as pl
from jax.experimental.pallas import tpu as pltpu


# ----------------------------- Pallas kernel ------------------------------- #
def lstm_kernel(x_ref, w_ih0_ref, w_hh0_ref, w_stack_ref, b_ref,
                w_out_ref, b_out_ref, out_ref, *,
                batch, batch_pad, seq_len, hidden, layers):
    """Multi-layer LSTM forward + final linear, fully vreg-resident.

    x_ref:       (S*BP, H)      time-major, batch/feature zero-padded, bf16
    w_ih0_ref:   (H, 4H)        layer-0 input->gates weights (T, padded), bf16
    w_hh0_ref:   (H, 4H)        layer-0 hidden->gates weights (T), bf16
    w_stack_ref: (L-1, 2H, 4H)  layers>=1: [W_ih_l.T; W_hh_l.T] stacked, bf16
    b_ref:       (L, 1, 4H)     b_ih + b_hh, f32
    w_out_ref:   (H, O)         final linear weight (T), f32
    b_out_ref:   (1, O)         final linear bias, f32
    out_ref:     (B, O)         predictions, f32
    """
    B, BP, S, H, L = batch, batch_pad, seq_len, hidden, layers
    f32 = jnp.float32
    bf16 = jnp.bfloat16

    # Hoisted layer-0 input projection for ALL timesteps: one MXU matmul,
    # off the serial recurrence chain.  (S*BP, H) @ (H, 4H) -> (S*BP, 4H) f32.
    pre0 = (jnp.dot(x_ref[...], w_ih0_ref[...], preferred_element_type=f32)
            + b_ref[0])

    w_hh0 = w_hh0_ref[...]                                   # (H, 4H) bf16
    w_stack = [w_stack_ref[l - 1] for l in range(1, L)]      # each (2H, 4H)
    bias = [b_ref[l] for l in range(L)]                      # each (1, 4H) f32

    h = [jnp.zeros((BP, H), f32) for _ in range(L)]
    c = [jnp.zeros((BP, H), f32) for _ in range(L)]

    def cell(gates, c_prev):
        # One full-width EUP sigmoid; tanh only on the g-gate lane slice.
        sig = jax.nn.sigmoid(gates)                          # (BP, 4H)
        i_g = sig[:, 0 * H:1 * H]
        f_g = sig[:, 1 * H:2 * H]
        o_g = sig[:, 3 * H:4 * H]
        g_g = jnp.tanh(gates[:, 2 * H:3 * H])
        c_new = f_g * c_prev + i_g * g_g
        h_new = o_g * jnp.tanh(c_new)
        return h_new, c_new

    # Wavefront over (timestep, layer): at wavefront w, layer l handles
    # t = w - l.  Layers are visited deepest-first inside a wavefront so
    # h[l-1] still holds the timestep-t output when layer l consumes it.
    for w in range(S + L - 1):
        for l in range(L - 1, -1, -1):
            t = w - l
            if not 0 <= t < S:
                continue
            if l == 0:
                # Aligned whole-tile slice of the hoisted projection + the
                # single recurrent matmul (bf16 operands, f32 accumulate).
                gates = pre0[t * BP:(t + 1) * BP, :] + jnp.dot(
                    h[0].astype(bf16), w_hh0, preferred_element_type=f32)
            else:
                # Fused input+recurrent projection: [h_{l-1,t}, h_{l,t-1}]
                # against the stacked [W_ih_l; W_hh_l] weight block.
                lhs = jnp.concatenate([h[l - 1], h[l]], axis=1).astype(bf16)
                gates = jnp.dot(lhs, w_stack[l - 1],
                                preferred_element_type=f32) + bias[l]
            h[l], c[l] = cell(gates, c[l])

    # Linear head on the last layer's hidden state at t = S-1 (real rows only).
    out_ref[...] = (jnp.dot(h[L - 1][:B, :], w_out_ref[...],
                            preferred_element_type=f32) + b_out_ref[...])


# ------------------------------ JAX wrapper -------------------------------- #
@jax.jit
def lstm_model_forward(x_bsf, w_ih0, w_hh0, w_stack, b, w_out, b_out):
    """x_bsf: (B, S, input_size) batch_first, like the PyTorch module."""
    B, S, F = x_bsf.shape
    L = b.shape[0]
    H = w_hh0.shape[0]
    O = w_out.shape[1]
    BP = max(8, ((B + 7) // 8) * 8)     # pad batch rows to whole sublane tiles
    assert F <= H, "feature-padding scheme assumes input_size <= hidden_size"

    # Time-major + batch/feature zero-pad so each timestep is one aligned
    # (8, lanes) tile; flatten to a lane-dense (S*BP, H) slab (tiny XLA op).
    x_tm = jnp.transpose(x_bsf.astype(jnp.float32), (1, 0, 2))        # (S,B,F)
    x_pad = jnp.zeros((S, BP, H), jnp.float32).at[:, :B, :F].set(x_tm)
    x_flat = x_pad.reshape(S * BP, H).astype(jnp.bfloat16)

    kernel = functools.partial(lstm_kernel, batch=B, batch_pad=BP,
                               seq_len=S, hidden=H, layers=L)
    vmem = pl.BlockSpec(memory_space=pltpu.MemorySpace.VMEM)
    return pl.pallas_call(
        kernel,
        out_shape=jax.ShapeDtypeStruct((B, O), jnp.float32),
        in_specs=[vmem] * 7,
        out_specs=vmem,
    )(x_flat, w_ih0, w_hh0, w_stack, b, w_out, b_out)


# -------------------------- Parameter construction ------------------------- #
def init_params(key, input_size, hidden, num_layers, output_size):
    """Deterministic PyTorch-style init; returns kernel-layout + raw params."""
    H, H4 = hidden, 4 * hidden
    stdv = 1.0 / jnp.sqrt(hidden)

    keys = jax.random.split(key, 4 * num_layers + 2)
    raw = []
    w_ih0 = w_hh0 = None
    stack_list, b_list = [], []
    for l in range(num_layers):
        in_l = input_size if l == 0 else hidden
        k0, k1, k2, k3 = keys[4 * l:4 * l + 4]
        W_ih = jax.random.uniform(k0, (H4, in_l), jnp.float32, -stdv, stdv)
        W_hh = jax.random.uniform(k1, (H4, H), jnp.float32, -stdv, stdv)
        b_ih = jax.random.uniform(k2, (H4,), jnp.float32, -stdv, stdv)
        b_hh = jax.random.uniform(k3, (H4,), jnp.float32, -stdv, stdv)
        raw.append((W_ih, W_hh, b_ih, b_hh))
        b_list.append((b_ih + b_hh).reshape(1, H4))

        if l == 0:
            # Transpose to (in, 4H) and zero-pad the feature dim up to H.
            w_ih0 = jnp.zeros((H, H4), jnp.float32).at[:in_l, :].set(W_ih.T)
            w_hh0 = W_hh.T
        else:
            # Stacked [W_ih_l.T; W_hh_l.T] block for the fused per-step matmul.
            stack_list.append(jnp.concatenate([W_ih.T, W_hh.T], axis=0))

    kw, kb = keys[-2], keys[-1]
    lin_std = 1.0 / jnp.sqrt(hidden)
    W_lin = jax.random.uniform(kw, (output_size, H), jnp.float32,
                               -lin_std, lin_std)
    b_lin = jax.random.uniform(kb, (output_size,), jnp.float32,
                               -lin_std, lin_std)

    kernel_params = (
        w_ih0.astype(jnp.bfloat16),                      # (H, 4H)
        w_hh0.astype(jnp.bfloat16),                      # (H, 4H)
        jnp.stack(stack_list).astype(jnp.bfloat16),      # (L-1, 2H, 4H)
        jnp.stack(b_list),                               # (L, 1, 4H) f32
        W_lin.T,                                         # (H, O) f32
        b_lin.reshape(1, output_size),                   # (1, O) f32
    )
    return kernel_params, (raw, W_lin, b_lin)


# ---------------------------- Pure-JAX reference ---------------------------- #
def reference_forward(x_bsf, raw_params, W_lin, b_lin, hidden):
    raw, H = raw_params, hidden
    B, S, _ = x_bsf.shape
    layer_in = x_bsf.astype(jnp.float32)
    for (W_ih, W_hh, b_ih, b_hh) in raw:
        h = jnp.zeros((B, H), jnp.float32)
        c = jnp.zeros((B, H), jnp.float32)
        outs = []
        for t in range(S):
            g = layer_in[:, t, :] @ W_ih.T + b_ih + h @ W_hh.T + b_hh
            i_g = jax.nn.sigmoid(g[:, 0 * H:1 * H])
            f_g = jax.nn.sigmoid(g[:, 1 * H:2 * H])
            g_g = jnp.tanh(g[:, 2 * H:3 * H])
            o_g = jax.nn.sigmoid(g[:, 3 * H:4 * H])
            c = f_g * c + i_g * g_g
            h = o_g * jnp.tanh(c)
            outs.append(h)
        layer_in = jnp.stack(outs, axis=1)
    return layer_in[:, -1, :] @ W_lin.T + b_lin


# ----------------------------------- Main ----------------------------------- #
if __name__ == "__main__":
    # Small shapes consistent with the module's forward:
    # input_seq: (batch=2, seq=8, input_size=4), hidden=32, num_layers=2, out=1
    BATCH, SEQ, INPUT_SIZE = 2, 8, 4
    HIDDEN, NUM_LAYERS, OUTPUT_SIZE = 32, 2, 1

    key = jax.random.PRNGKey(0)
    k_x, k_p = jax.random.split(key)
    x = jax.random.normal(k_x, (BATCH, SEQ, INPUT_SIZE), jnp.float32)

    kernel_params, (raw, W_lin, b_lin) = init_params(
        k_p, INPUT_SIZE, HIDDEN, NUM_LAYERS, OUTPUT_SIZE)

    preds = lstm_model_forward(x, *kernel_params)
    preds = jax.block_until_ready(preds)
    assert preds.shape == (BATCH, OUTPUT_SIZE)

    ref = reference_forward(x, raw, W_lin, b_lin, HIDDEN)
    # bf16 matmul operands vs. the f32 reference -> relaxed tolerance.
    assert jnp.allclose(preds, ref, atol=5e-2, rtol=5e-2), (preds, ref)

    print("KERNEL_OK")
</pallas_src>

<mosaic_0001>
module attributes {stable_mosaic.version = 11 : i64} {
  func.func @lstm_kernel(%arg0: memref<64x32xbf16, #tpu.memory_space<vmem>>, %arg1: memref<32x128xbf16, #tpu.memory_space<vmem>>, %arg2: memref<32x128xbf16, #tpu.memory_space<vmem>>, %arg3: memref<1x64x128xbf16, #tpu.memory_space<vmem>>, %arg4: memref<2x1x128xf32, #tpu.memory_space<vmem>>, %arg5: memref<32x1xf32, #tpu.memory_space<vmem>>, %arg6: memref<1x1xf32, #tpu.memory_space<vmem>>, %arg7: memref<2x1xf32, #tpu.memory_space<vmem>>) attributes {dimension_semantics = [], scalar_prefetch = 0 : i64, scratch_operands = 0 : i64, tpu.core_type = #tpu.core_type<tc>} {
    %c0 = arith.constant 0 : index
    %c0_0 = arith.constant 0 : index
    %0 = vector.load %arg0[%c0, %c0_0] : memref<64x32xbf16, #tpu.memory_space<vmem>>, vector<64x32xbf16>
    %c0_1 = arith.constant 0 : index
    %c0_2 = arith.constant 0 : index
    %1 = vector.load %arg1[%c0_1, %c0_2] : memref<32x128xbf16, #tpu.memory_space<vmem>>, vector<32x128xbf16>
    %cst = arith.constant dense<0.000000e+00> : vector<64x128xf32>
    %2 = tpu.matmul %0, %1, %cst {dimension_numbers = #tpu.dot_dimension_numbers<[1], [0], [0], [1], [0, 0, 1, 1], [], []>} : vector<64x32xbf16>, vector<32x128xbf16>, vector<64x128xf32> -> vector<64x128xf32>
    %c0_3 = arith.constant 0 : index
    %c0_4 = arith.constant 0 : index
    %c0_5 = arith.constant 0 : index
    %3 = vector.load %arg4[%c0_3, %c0_4, %c0_5] : memref<2x1x128xf32, #tpu.memory_space<vmem>>, vector<1x1x128xf32>
    %4 = vector.shape_cast %3 : vector<1x1x128xf32> to vector<1x128xf32>
    %5 = vector.broadcast %4 : vector<1x128xf32> to vector<64x128xf32>
    %6 = arith.addf %2, %5 : vector<64x128xf32>
    %c0_6 = arith.constant 0 : index
    %c0_7 = arith.constant 0 : index
    %7 = vector.load %arg2[%c0_6, %c0_7] : memref<32x128xbf16, #tpu.memory_space<vmem>>, vector<32x128xbf16>
    %c0_8 = arith.constant 0 : index
    %c0_9 = arith.constant 0 : index
    %c0_10 = arith.constant 0 : index
    %8 = vector.load %arg3[%c0_8, %c0_9, %c0_10] : memref<1x64x128xbf16, #tpu.memory_space<vmem>>, vector<1x64x128xbf16>
    %9 = vector.shape_cast %8 : vector<1x64x128xbf16> to vector<64x128xbf16>
    %c1 = arith.constant 1 : index
    %c0_11 = arith.constant 0 : index
    %c0_12 = arith.constant 0 : index
    %10 = vector.load %arg4[%c1, %c0_11, %c0_12] : memref<2x1x128xf32, #tpu.memory_space<vmem>>, vector<1x1x128xf32>
    %11 = vector.shape_cast %10 : vector<1x1x128xf32> to vector<1x128xf32>
    %cst_13 = arith.constant 0.000000e+00 : f32
    %12 = vector.broadcast %cst_13 : f32 to vector<8x32xf32>
    %cst_14 = arith.constant 0.000000e+00 : f32
    %13 = vector.broadcast %cst_14 : f32 to vector<8x32xf32>
    %cst_15 = arith.constant 0.000000e+00 : f32
    %14 = vector.broadcast %cst_15 : f32 to vector<8x32xf32>
    %cst_16 = arith.constant 0.000000e+00 : f32
    %15 = vector.broadcast %cst_16 : f32 to vector<8x32xf32>
    %16 = vector.extract_strided_slice %6 {offsets = [0, 0], sizes = [8, 128], strides = [1, 1]} : vector<64x128xf32> to vector<8x128xf32>
    %17 = arith.truncf %12 : vector<8x32xf32> to vector<8x32xbf16>
    %cst_17 = arith.constant dense<0.000000e+00> : vector<8x128xf32>
    %18 = tpu.matmul %17, %7, %cst_17 {dimension_numbers = #tpu.dot_dimension_numbers<[1], [0], [0], [1], [0, 0, 1, 1], [], []>} : vector<8x32xbf16>, vector<32x128xbf16>, vector<8x128xf32> -> vector<8x128xf32>
    %19 = arith.addf %16, %18 : vector<8x128xf32>
    %20 = arith.negf %19 : vector<8x128xf32>
    %21 = math.exp %20 : vector<8x128xf32>
    %cst_18 = arith.constant 1.000000e+00 : f32
    %22 = vector.broadcast %cst_18 : f32 to vector<8x128xf32>
    %23 = arith.addf %22, %21 : vector<8x128xf32>
    %24 = arith.divf %22, %23 : vector<8x128xf32>
    %25 = vector.extract_strided_slice %24 {offsets = [0, 0], sizes = [8, 32], strides = [1, 1]} : vector<8x128xf32> to vector<8x32xf32>
    %26 = vector.extract_strided_slice %24 {offsets = [0, 32], sizes = [8, 32], strides = [1, 1]} : vector<8x128xf32> to vector<8x32xf32>
    %27 = vector.extract_strided_slice %24 {offsets = [0, 96], sizes = [8, 32], strides = [1, 1]} : vector<8x128xf32> to vector<8x32xf32>
    %28 = vector.extract_strided_slice %19 {offsets = [0, 64], sizes = [8, 32], strides = [1, 1]} : vector<8x128xf32> to vector<8x32xf32>
    %29 = math.tanh %28 : vector<8x32xf32>
    %30 = arith.mulf %26, %14 : vector<8x32xf32>
    %31 = arith.mulf %25, %29 : vector<8x32xf32>
    %32 = arith.addf %30, %31 : vector<8x32xf32>
    %33 = math.tanh %32 : vector<8x32xf32>
    %34 = arith.mulf %27, %33 : vector<8x32xf32>
    %35 = tpu.concatenate %34, %13 in 1 : vector<8x32xf32>, vector<8x32xf32> -> vector<8x64xf32>
    %36 = arith.truncf %35 : vector<8x64xf32> to vector<8x64xbf16>
    %cst_19 = arith.constant dense<0.000000e+00> : vector<8x128xf32>
    %37 = tpu.matmul %36, %9, %cst_19 {dimension_numbers = #tpu.dot_dimension_numbers<[1], [0], [0], [1], [0, 0, 1, 1], [], []>} : vector<8x64xbf16>, vector<64x128xbf16>, vector<8x128xf32> -> vector<8x128xf32>
    %38 = vector.broadcast %11 : vector<1x128xf32> to vector<8x128xf32>
    %39 = arith.addf %37, %38 : vector<8x128xf32>
    %40 = arith.negf %39 : vector<8x128xf32>
    %41 = math.exp %40 : vector<8x128xf32>
    %cst_20 = arith.constant 1.000000e+00 : f32
    %42 = vector.broadcast %cst_20 : f32 to vector<8x128xf32>
    %43 = arith.addf %42, %41 : vector<8x128xf32>
    %44 = arith.divf %42, %43 : vector<8x128xf32>
    %45 = vector.extract_strided_slice %44 {offsets = [0, 0], sizes = [8, 32], strides = [1, 1]} : vector<8x128xf32> to vector<8x32xf32>
    %46 = vector.extract_strided_slice %44 {offsets = [0, 32], sizes = [8, 32], strides = [1, 1]} : vector<8x128xf32> to vector<8x32xf32>
    %47 = vector.extract_strided_slice %44 {offsets = [0, 96], sizes = [8, 32], strides = [1, 1]} : vector<8x128xf32> to vector<8x32xf32>
    %48 = vector.extract_strided_slice %39 {offsets = [0, 64], sizes = [8, 32], strides = [1, 1]} : vector<8x128xf32> to vector<8x32xf32>
    %49 = math.tanh %48 : vector<8x32xf32>
    %50 = arith.mulf %46, %15 : vector<8x32xf32>
    %51 = arith.mulf %45, %49 : vector<8x32xf32>
    %52 = arith.addf %50, %51 : vector<8x32xf32>
    %53 = math.tanh %52 : vector<8x32xf32>
    %54 = arith.mulf %47, %53 : vector<8x32xf32>
    %55 = vector.extract_strided_slice %6 {offsets = [8, 0], sizes = [8, 128], strides = [1, 1]} : vector<64x128xf32> to vector<8x128xf32>
    %56 = arith.truncf %34 : vector<8x32xf32> to vector<8x32xbf16>
    %cst_21 = arith.constant dense<0.000000e+00> : vector<8x128xf32>
    %57 = tpu.matmul %56, %7, %cst_21 {dimension_numbers = #tpu.dot_dimension_numbers<[1], [0], [0], [1], [0, 0, 1, 1], [], []>} : vector<8x32xbf16>, vector<32x128xbf16>, vector<8x128xf32> -> vector<8x128xf32>
    %58 = arith.addf %55, %57 : vector<8x128xf32>
    %59 = arith.negf %58 : vector<8x128xf32>
    %60 = math.exp %59 : vector<8x128xf32>
    %cst_22 = arith.constant 1.000000e+00 : f32
    %61 = vector.broadcast %cst_22 : f32 to vector<8x128xf32>
    %62 = arith.addf %61, %60 : vector<8x128xf32>
    %63 = arith.divf %61, %62 : vector<8x128xf32>
    %64 = vector.extract_strided_slice %63 {offsets = [0, 0], sizes = [8, 32], strides = [1, 1]} : vector<8x128xf32> to vector<8x32xf32>
    %65 = vector.extract_strided_slice %63 {offsets = [0, 32], sizes = [8, 32], strides = [1, 1]} : vector<8x128xf32> to vector<8x32xf32>
    %66 = vector.extract_strided_slice %63 {offsets = [0, 96], sizes = [8, 32], strides = [1, 1]} : vector<8x128xf32> to vector<8x32xf32>
    %67 = vector.extract_strided_slice %58 {offsets = [0, 64], sizes = [8, 32], strides = [1, 1]} : vector<8x128xf32> to vector<8x32xf32>
    %68 = math.tanh %67 : vector<8x32xf32>
    %69 = arith.mulf %65, %32 : vector<8x32xf32>
    %70 = arith.mulf %64, %68 : vector<8x32xf32>
    %71 = arith.addf %69, %70 : vector<8x32xf32>
    %72 = math.tanh %71 : vector<8x32xf32>
    %73 = arith.mulf %66, %72 : vector<8x32xf32>
    %74 = tpu.concatenate %73, %54 in 1 : vector<8x32xf32>, vector<8x32xf32> -> vector<8x64xf32>
    %75 = arith.truncf %74 : vector<8x64xf32> to vector<8x64xbf16>
    %cst_23 = arith.constant dense<0.000000e+00> : vector<8x128xf32>
    %76 = tpu.matmul %75, %9, %cst_23 {dimension_numbers = #tpu.dot_dimension_numbers<[1], [0], [0], [1], [0, 0, 1, 1], [], []>} : vector<8x64xbf16>, vector<64x128xbf16>, vector<8x128xf32> -> vector<8x128xf32>
    %77 = vector.broadcast %11 : vector<1x128xf32> to vector<8x128xf32>
    %78 = arith.addf %76, %77 : vector<8x128xf32>
    %79 = arith.negf %78 : vector<8x128xf32>
    %80 = math.exp %79 : vector<8x128xf32>
    %cst_24 = arith.constant 1.000000e+00 : f32
    %81 = vector.broadcast %cst_24 : f32 to vector<8x128xf32>
    %82 = arith.addf %81, %80 : vector<8x128xf32>
    %83 = arith.divf %81, %82 : vector<8x128xf32>
    %84 = vector.extract_strided_slice %83 {offsets = [0, 0], sizes = [8, 32], strides = [1, 1]} : vector<8x128xf32> to vector<8x32xf32>
    %85 = vector.extract_strided_slice %83 {offsets = [0, 32], sizes = [8, 32], strides = [1, 1]} : vector<8x128xf32> to vector<8x32xf32>
    %86 = vector.extract_strided_slice %83 {offsets = [0, 96], sizes = [8, 32], strides = [1, 1]} : vector<8x128xf32> to vector<8x32xf32>
    %87 = vector.extract_strided_slice %78 {offsets = [0, 64], sizes = [8, 32], strides = [1, 1]} : vector<8x128xf32> to vector<8x32xf32>
    %88 = math.tanh %87 : vector<8x32xf32>
    %89 = arith.mulf %85, %52 : vector<8x32xf32>
    %90 = arith.mulf %84, %88 : vector<8x32xf32>
    %91 = arith.addf %89, %90 : vector<8x32xf32>
    %92 = math.tanh %91 : vector<8x32xf32>
    %93 = arith.mulf %86, %92 : vector<8x32xf32>
    %94 = vector.extract_strided_slice %6 {offsets = [16, 0], sizes = [8, 128], strides = [1, 1]} : vector<64x128xf32> to vector<8x128xf32>
    %95 = arith.truncf %73 : vector<8x32xf32> to vector<8x32xbf16>
    %cst_25 = arith.constant dense<0.000000e+00> : vector<8x128xf32>
    %96 = tpu.matmul %95, %7, %cst_25 {dimension_numbers = #tpu.dot_dimension_numbers<[1], [0], [0], [1], [0, 0, 1, 1], [], []>} : vector<8x32xbf16>, vector<32x128xbf16>, vector<8x128xf32> -> vector<8x128xf32>
    %97 = arith.addf %94, %96 : vector<8x128xf32>
    %98 = arith.negf %97 : vector<8x128xf32>
    %99 = math.exp %98 : vector<8x128xf32>
    %cst_26 = arith.constant 1.000000e+00 : f32
    %100 = vector.broadcast %cst_26 : f32 to vector<8x128xf32>
    %101 = arith.addf %100, %99 : vector<8x128xf32>
    %102 = arith.divf %100, %101 : vector<8x128xf32>
    %103 = vector.extract_strided_slice %102 {offsets = [0, 0], sizes = [8, 32], strides = [1, 1]} : vector<8x128xf32> to vector<8x32xf32>
    %104 = vector.extract_strided_slice %102 {offsets = [0, 32], sizes = [8, 32], strides = [1, 1]} : vector<8x128xf32> to vector<8x32xf32>
    %105 = vector.extract_strided_slice %102 {offsets = [0, 96], sizes = [8, 32], strides = [1, 1]} : vector<8x128xf32> to vector<8x32xf32>
    %106 = vector.extract_strided_slice %97 {offsets = [0, 64], sizes = [8, 32], strides = [1, 1]} : vector<8x128xf32> to vector<8x32xf32>
    %107 = math.tanh %106 : vector<8x32xf32>
    %108 = arith.mulf %104, %71 : vector<8x32xf32>
    %109 = arith.mulf %103, %107 : vector<8x32xf32>
    %110 = arith.addf %108, %109 : vector<8x32xf32>
    %111 = math.tanh %110 : vector<8x32xf32>
    %112 = arith.mulf %105, %111 : vector<8x32xf32>
    %113 = tpu.concatenate %112, %93 in 1 : vector<8x32xf32>, vector<8x32xf32> -> vector<8x64xf32>
    %114 = arith.truncf %113 : vector<8x64xf32> to vector<8x64xbf16>
    %cst_27 = arith.constant dense<0.000000e+00> : vector<8x128xf32>
    %115 = tpu.matmul %114, %9, %cst_27 {dimension_numbers = #tpu.dot_dimension_numbers<[1], [0], [0], [1], [0, 0, 1, 1], [], []>} : vector<8x64xbf16>, vector<64x128xbf16>, vector<8x128xf32> -> vector<8x128xf32>
    %116 = vector.broadcast %11 : vector<1x128xf32> to vector<8x128xf32>
    %117 = arith.addf %115, %116 : vector<8x128xf32>
    %118 = arith.negf %117 : vector<8x128xf32>
    %119 = math.exp %118 : vector<8x128xf32>
    %cst_28 = arith.constant 1.000000e+00 : f32
    %120 = vector.broadcast %cst_28 : f32 to vector<8x128xf32>
    %121 = arith.addf %120, %119 : vector<8x128xf32>
    %122 = arith.divf %120, %121 : vector<8x128xf32>
    %123 = vector.extract_strided_slice %122 {offsets = [0, 0], sizes = [8, 32], strides = [1, 1]} : vector<8x128xf32> to vector<8x32xf32>
    %124 = vector.extract_strided_slice %122 {offsets = [0, 32], sizes = [8, 32], strides = [1, 1]} : vector<8x128xf32> to vector<8x32xf32>
    %125 = vector.extract_strided_slice %122 {offsets = [0, 96], sizes = [8, 32], strides = [1, 1]} : vector<8x128xf32> to vector<8x32xf32>
    %126 = vector.extract_strided_slice %117 {offsets = [0, 64], sizes = [8, 32], strides = [1, 1]} : vector<8x128xf32> to vector<8x32xf32>
    %127 = math.tanh %126 : vector<8x32xf32>
    %128 = arith.mulf %124, %91 : vector<8x32xf32>
    %129 = arith.mulf %123, %127 : vector<8x32xf32>
    %130 = arith.addf %128, %129 : vector<8x32xf32>
    %131 = math.tanh %130 : vector<8x32xf32>
    %132 = arith.mulf %125, %131 : vector<8x32xf32>
    %133 = vector.extract_strided_slice %6 {offsets = [24, 0], sizes = [8, 128], strides = [1, 1]} : vector<64x128xf32> to vector<8x128xf32>
    %134 = arith.truncf %112 : vector<8x32xf32> to vector<8x32xbf16>
    %cst_29 = arith.constant dense<0.000000e+00> : vector<8x128xf32>
    %135 = tpu.matmul %134, %7, %cst_29 {dimension_numbers = #tpu.dot_dimension_numbers<[1], [0], [0], [1], [0, 0, 1, 1], [], []>} : vector<8x32xbf16>, vector<32x128xbf16>, vector<8x128xf32> -> vector<8x128xf32>
    %136 = arith.addf %133, %135 : vector<8x128xf32>
    %137 = arith.negf %136 : vector<8x128xf32>
    %138 = math.exp %137 : vector<8x128xf32>
    %cst_30 = arith.constant 1.000000e+00 : f32
    %139 = vector.broadcast %cst_30 : f32 to vector<8x128xf32>
    %140 = arith.addf %139, %138 : vector<8x128xf32>
    %141 = arith.divf %139, %140 : vector<8x128xf32>
    %142 = vector.extract_strided_slice %141 {offsets = [0, 0], sizes = [8, 32], strides = [1, 1]} : vector<8x128xf32> to vector<8x32xf32>
    %143 = vector.extract_strided_slice %141 {offsets = [0, 32], sizes = [8, 32], strides = [1, 1]} : vector<8x128xf32> to vector<8x32xf32>
    %144 = vector.extract_strided_slice %141 {offsets = [0, 96], sizes = [8, 32], strides = [1, 1]} : vector<8x128xf32> to vector<8x32xf32>
    %145 = vector.extract_strided_slice %136 {offsets = [0, 64], sizes = [8, 32], strides = [1, 1]} : vector<8x128xf32> to vector<8x32xf32>
    %146 = math.tanh %145 : vector<8x32xf32>
    %147 = arith.mulf %143, %110 : vector<8x32xf32>
    %148 = arith.mulf %142, %146 : vector<8x32xf32>
    %149 = arith.addf %147, %148 : vector<8x32xf32>
    %150 = math.tanh %149 : vector<8x32xf32>
    %151 = arith.mulf %144, %150 : vector<8x32xf32>
    %152 = tpu.concatenate %151, %132 in 1 : vector<8x32xf32>, vector<8x32xf32> -> vector<8x64xf32>
    %153 = arith.truncf %152 : vector<8x64xf32> to vector<8x64xbf16>
    %cst_31 = arith.constant dense<0.000000e+00> : vector<8x128xf32>
    %154 = tpu.matmul %153, %9, %cst_31 {dimension_numbers = #tpu.dot_dimension_numbers<[1], [0], [0], [1], [0, 0, 1, 1], [], []>} : vector<8x64xbf16>, vector<64x128xbf16>, vector<8x128xf32> -> vector<8x128xf32>
    %155 = vector.broadcast %11 : vector<1x128xf32> to vector<8x128xf32>
    %156 = arith.addf %154, %155 : vector<8x128xf32>
    %157 = arith.negf %156 : vector<8x128xf32>
    %158 = math.exp %157 : vector<8x128xf32>
    %cst_32 = arith.constant 1.000000e+00 : f32
    %159 = vector.broadcast %cst_32 : f32 to vector<8x128xf32>
    %160 = arith.addf %159, %158 : vector<8x128xf32>
    %161 = arith.divf %159, %160 : vector<8x128xf32>
    %162 = vector.extract_strided_slice %161 {offsets = [0, 0], sizes = [8, 32], strides = [1, 1]} : vector<8x128xf32> to vector<8x32xf32>
    %163 = vector.extract_strided_slice %161 {offsets = [0, 32], sizes = [8, 32], strides = [1, 1]} : vector<8x128xf32> to vector<8x32xf32>
    %164 = vector.extract_strided_slice %161 {offsets = [0, 96], sizes = [8, 32], strides = [1, 1]} : vector<8x128xf32> to vector<8x32xf32>
    %165 = vector.extract_strided_slice %156 {offsets = [0, 64], sizes = [8, 32], strides = [1, 1]} : vector<8x128xf32> to vector<8x32xf32>
    %166 = math.tanh %165 : vector<8x32xf32>
    %167 = arith.mulf %163, %130 : vector<8x32xf32>
    %168 = arith.mulf %162, %166 : vector<8x32xf32>
    %169 = arith.addf %167, %168 : vector<8x32xf32>
    %170 = math.tanh %169 : vector<8x32xf32>
    %171 = arith.mulf %164, %170 : vector<8x32xf32>
    %172 = vector.extract_strided_slice %6 {offsets = [32, 0], sizes = [8, 128], strides = [1, 1]} : vector<64x128xf32> to vector<8x128xf32>
    %173 = arith.truncf %151 : vector<8x32xf32> to vector<8x32xbf16>
    %cst_33 = arith.constant dense<0.000000e+00> : vector<8x128xf32>
    %174 = tpu.matmul %173, %7, %cst_33 {dimension_numbers = #tpu.dot_dimension_numbers<[1], [0], [0], [1], [0, 0, 1, 1], [], []>} : vector<8x32xbf16>, vector<32x128xbf16>, vector<8x128xf32> -> vector<8x128xf32>
    %175 = arith.addf %172, %174 : vector<8x128xf32>
    %176 = arith.negf %175 : vector<8x128xf32>
    %177 = math.exp %176 : vector<8x128xf32>
    %cst_34 = arith.constant 1.000000e+00 : f32
    %178 = vector.broadcast %cst_34 : f32 to vector<8x128xf32>
    %179 = arith.addf %178, %177 : vector<8x128xf32>
    %180 = arith.divf %178, %179 : vector<8x128xf32>
    %181 = vector.extract_strided_slice %180 {offsets = [0, 0], sizes = [8, 32], strides = [1, 1]} : vector<8x128xf32> to vector<8x32xf32>
    %182 = vector.extract_strided_slice %180 {offsets = [0, 32], sizes = [8, 32], strides = [1, 1]} : vector<8x128xf32> to vector<8x32xf32>
    %183 = vector.extract_strided_slice %180 {offsets = [0, 96], sizes = [8, 32], strides = [1, 1]} : vector<8x128xf32> to vector<8x32xf32>
    %184 = vector.extract_strided_slice %175 {offsets = [0, 64], sizes = [8, 32], strides = [1, 1]} : vector<8x128xf32> to vector<8x32xf32>
    %185 = math.tanh %184 : vector<8x32xf32>
    %186 = arith.mulf %182, %149 : vector<8x32xf32>
    %187 = arith.mulf %181, %185 : vector<8x32xf32>
    %188 = arith.addf %186, %187 : vector<8x32xf32>
    %189 = math.tanh %188 : vector<8x32xf32>
    %190 = arith.mulf %183, %189 : vector<8x32xf32>
    %191 = tpu.concatenate %190, %171 in 1 : vector<8x32xf32>, vector<8x32xf32> -> vector<8x64xf32>
    %192 = arith.truncf %191 : vector<8x64xf32> to vector<8x64xbf16>
    %cst_35 = arith.constant dense<0.000000e+00> : vector<8x128xf32>
    %193 = tpu.matmul %192, %9, %cst_35 {dimension_numbers = #tpu.dot_dimension_numbers<[1], [0], [0], [1], [0, 0, 1, 1], [], []>} : vector<8x64xbf16>, vector<64x128xbf16>, vector<8x128xf32> -> vector<8x128xf32>
    %194 = vector.broadcast %11 : vector<1x128xf32> to vector<8x128xf32>
    %195 = arith.addf %193, %194 : vector<8x128xf32>
    %196 = arith.negf %195 : vector<8x128xf32>
    %197 = math.exp %196 : vector<8x128xf32>
    %cst_36 = arith.constant 1.000000e+00 : f32
    %198 = vector.broadcast %cst_36 : f32 to vector<8x128xf32>
    %199 = arith.addf %198, %197 : vector<8x128xf32>
    %200 = arith.divf %198, %199 : vector<8x128xf32>
    %201 = vector.extract_strided_slice %200 {offsets = [0, 0], sizes = [8, 32], strides = [1, 1]} : vector<8x128xf32> to vector<8x32xf32>
    %202 = vector.extract_strided_slice %200 {offsets = [0, 32], sizes = [8, 32], strides = [1, 1]} : vector<8x128xf32> to vector<8x32xf32>
    %203 = vector.extract_strided_slice %200 {offsets = [0, 96], sizes = [8, 32], strides = [1, 1]} : vector<8x128xf32> to vector<8x32xf32>
    %204 = vector.extract_strided_slice %195 {offsets = [0, 64], sizes = [8, 32], strides = [1, 1]} : vector<8x128xf32> to vector<8x32xf32>
    %205 = math.tanh %204 : vector<8x32xf32>
    %206 = arith.mulf %202, %169 : vector<8x32xf32>
    %207 = arith.mulf %201, %205 : vector<8x32xf32>
    %208 = arith.addf %206, %207 : vector<8x32xf32>
    %209 = math.tanh %208 : vector<8x32xf32>
    %210 = arith.mulf %203, %209 : vector<8x32xf32>
    %211 = vector.extract_strided_slice %6 {offsets = [40, 0], sizes = [8, 128], strides = [1, 1]} : vector<64x128xf32> to vector<8x128xf32>
    %212 = arith.truncf %190 : vector<8x32xf32> to vector<8x32xbf16>
    %cst_37 = arith.constant dense<0.000000e+00> : vector<8x128xf32>
    %213 = tpu.matmul %212, %7, %cst_37 {dimension_numbers = #tpu.dot_dimension_numbers<[1], [0], [0], [1], [0, 0, 1, 1], [], []>} : vector<8x32xbf16>, vector<32x128xbf16>, vector<8x128xf32> -> vector<8x128xf32>
    %214 = arith.addf %211, %213 : vector<8x128xf32>
    %215 = arith.negf %214 : vector<8x128xf32>
    %216 = math.exp %215 : vector<8x128xf32>
    %cst_38 = arith.constant 1.000000e+00 : f32
    %217 = vector.broadcast %cst_38 : f32 to vector<8x128xf32>
    %218 = arith.addf %217, %216 : vector<8x128xf32>
    %219 = arith.divf %217, %218 : vector<8x128xf32>
    %220 = vector.extract_strided_slice %219 {offsets = [0, 0], sizes = [8, 32], strides = [1, 1]} : vector<8x128xf32> to vector<8x32xf32>
    %221 = vector.extract_strided_slice %219 {offsets = [0, 32], sizes = [8, 32], strides = [1, 1]} : vector<8x128xf32> to vector<8x32xf32>
    %222 = vector.extract_strided_slice %219 {offsets = [0, 96], sizes = [8, 32], strides = [1, 1]} : vector<8x128xf32> to vector<8x32xf32>
    %223 = vector.extract_strided_slice %214 {offsets = [0, 64], sizes = [8, 32], strides = [1, 1]} : vector<8x128xf32> to vector<8x32xf32>
    %224 = math.tanh %223 : vector<8x32xf32>
    %225 = arith.mulf %221, %188 : vector<8x32xf32>
    %226 = arith.mulf %220, %224 : vector<8x32xf32>
    %227 = arith.addf %225, %226 : vector<8x32xf32>
    %228 = math.tanh %227 : vector<8x32xf32>
    %229 = arith.mulf %222, %228 : vector<8x32xf32>
    %230 = tpu.concatenate %229, %210 in 1 : vector<8x32xf32>, vector<8x32xf32> -> vector<8x64xf32>
    %231 = arith.truncf %230 : vector<8x64xf32> to vector<8x64xbf16>
    %cst_39 = arith.constant dense<0.000000e+00> : vector<8x128xf32>
    %232 = tpu.matmul %231, %9, %cst_39 {dimension_numbers = #tpu.dot_dimension_numbers<[1], [0], [0], [1], [0, 0, 1, 1], [], []>} : vector<8x64xbf16>, vector<64x128xbf16>, vector<8x128xf32> -> vector<8x128xf32>
    %233 = vector.broadcast %11 : vector<1x128xf32> to vector<8x128xf32>
    %234 = arith.addf %232, %233 : vector<8x128xf32>
    %235 = arith.negf %234 : vector<8x128xf32>
    %236 = math.exp %235 : vector<8x128xf32>
    %cst_40 = arith.constant 1.000000e+00 : f32
    %237 = vector.broadcast %cst_40 : f32 to vector<8x128xf32>
    %238 = arith.addf %237, %236 : vector<8x128xf32>
    %239 = arith.divf %237, %238 : vector<8x128xf32>
    %240 = vector.extract_strided_slice %239 {offsets = [0, 0], sizes = [8, 32], strides = [1, 1]} : vector<8x128xf32> to vector<8x32xf32>
    %241 = vector.extract_strided_slice %239 {offsets = [0, 32], sizes = [8, 32], strides = [1, 1]} : vector<8x128xf32> to vector<8x32xf32>
    %242 = vector.extract_strided_slice %239 {offsets = [0, 96], sizes = [8, 32], strides = [1, 1]} : vector<8x128xf32> to vector<8x32xf32>
    %243 = vector.extract_strided_slice %234 {offsets = [0, 64], sizes = [8, 32], strides = [1, 1]} : vector<8x128xf32> to vector<8x32xf32>
    %244 = math.tanh %243 : vector<8x32xf32>
    %245 = arith.mulf %241, %208 : vector<8x32xf32>
    %246 = arith.mulf %240, %244 : vector<8x32xf32>
    %247 = arith.addf %245, %246 : vector<8x32xf32>
    %248 = math.tanh %247 : vector<8x32xf32>
    %249 = arith.mulf %242, %248 : vector<8x32xf32>
    %250 = vector.extract_strided_slice %6 {offsets = [48, 0], sizes = [8, 128], strides = [1, 1]} : vector<64x128xf32> to vector<8x128xf32>
    %251 = arith.truncf %229 : vector<8x32xf32> to vector<8x32xbf16>
    %cst_41 = arith.constant dense<0.000000e+00> : vector<8x128xf32>
    %252 = tpu.matmul %251, %7, %cst_41 {dimension_numbers = #tpu.dot_dimension_numbers<[1], [0], [0], [1], [0, 0, 1, 1], [], []>} : vector<8x32xbf16>, vector<32x128xbf16>, vector<8x128xf32> -> vector<8x128xf32>
    %253 = arith.addf %250, %252 : vector<8x128xf32>
    %254 = arith.negf %253 : vector<8x128xf32>
    %255 = math.exp %254 : vector<8x128xf32>
    %cst_42 = arith.constant 1.000000e+00 : f32
    %256 = vector.broadcast %cst_42 : f32 to vector<8x128xf32>
    %257 = arith.addf %256, %255 : vector<8x128xf32>
    %258 = arith.divf %256, %257 : vector<8x128xf32>
    %259 = vector.extract_strided_slice %258 {offsets = [0, 0], sizes = [8, 32], strides = [1, 1]} : vector<8x128xf32> to vector<8x32xf32>
    %260 = vector.extract_strided_slice %258 {offsets = [0, 32], sizes = [8, 32], strides = [1, 1]} : vector<8x128xf32> to vector<8x32xf32>
    %261 = vector.extract_strided_slice %258 {offsets = [0, 96], sizes = [8, 32], strides = [1, 1]} : vector<8x128xf32> to vector<8x32xf32>
    %262 = vector.extract_strided_slice %253 {offsets = [0, 64], sizes = [8, 32], strides = [1, 1]} : vector<8x128xf32> to vector<8x32xf32>
    %263 = math.tanh %262 : vector<8x32xf32>
    %264 = arith.mulf %260, %227 : vector<8x32xf32>
    %265 = arith.mulf %259, %263 : vector<8x32xf32>
    %266 = arith.addf %264, %265 : vector<8x32xf32>
    %267 = math.tanh %266 : vector<8x32xf32>
    %268 = arith.mulf %261, %267 : vector<8x32xf32>
    %269 = tpu.concatenate %268, %249 in 1 : vector<8x32xf32>, vector<8x32xf32> -> vector<8x64xf32>
    %270 = arith.truncf %269 : vector<8x64xf32> to vector<8x64xbf16>
    %cst_43 = arith.constant dense<0.000000e+00> : vector<8x128xf32>
    %271 = tpu.matmul %270, %9, %cst_43 {dimension_numbers = #tpu.dot_dimension_numbers<[1], [0], [0], [1], [0, 0, 1, 1], [], []>} : vector<8x64xbf16>, vector<64x128xbf16>, vector<8x128xf32> -> vector<8x128xf32>
    %272 = vector.broadcast %11 : vector<1x128xf32> to vector<8x128xf32>
    %273 = arith.addf %271, %272 : vector<8x128xf32>
    %274 = arith.negf %273 : vector<8x128xf32>
    %275 = math.exp %274 : vector<8x128xf32>
    %cst_44 = arith.constant 1.000000e+00 : f32
    %276 = vector.broadcast %cst_44 : f32 to vector<8x128xf32>
    %277 = arith.addf %276, %275 : vector<8x128xf32>
    %278 = arith.divf %276, %277 : vector<8x128xf32>
    %279 = vector.extract_strided_slice %278 {offsets = [0, 0], sizes = [8, 32], strides = [1, 1]} : vector<8x128xf32> to vector<8x32xf32>
    %280 = vector.extract_strided_slice %278 {offsets = [0, 32], sizes = [8, 32], strides = [1, 1]} : vector<8x128xf32> to vector<8x32xf32>
    %281 = vector.extract_strided_slice %278 {offsets = [0, 96], sizes = [8, 32], strides = [1, 1]} : vector<8x128xf32> to vector<8x32xf32>
    %282 = vector.extract_strided_slice %273 {offsets = [0, 64], sizes = [8, 32], strides = [1, 1]} : vector<8x128xf32> to vector<8x32xf32>
    %283 = math.tanh %282 : vector<8x32xf32>
    %284 = arith.mulf %280, %247 : vector<8x32xf32>
    %285 = arith.mulf %279, %283 : vector<8x32xf32>
    %286 = arith.addf %284, %285 : vector<8x32xf32>
    %287 = math.tanh %286 : vector<8x32xf32>
    %288 = arith.mulf %281, %287 : vector<8x32xf32>
    %289 = vector.extract_strided_slice %6 {offsets = [56, 0], sizes = [8, 128], strides = [1, 1]} : vector<64x128xf32> to vector<8x128xf32>
    %290 = arith.truncf %268 : vector<8x32xf32> to vector<8x32xbf16>
    %cst_45 = arith.constant dense<0.000000e+00> : vector<8x128xf32>
    %291 = tpu.matmul %290, %7, %cst_45 {dimension_numbers = #tpu.dot_dimension_numbers<[1], [0], [0], [1], [0, 0, 1, 1], [], []>} : vector<8x32xbf16>, vector<32x128xbf16>, vector<8x128xf32> -> vector<8x128xf32>
    %292 = arith.addf %289, %291 : vector<8x128xf32>
    %293 = arith.negf %292 : vector<8x128xf32>
    %294 = math.exp %293 : vector<8x128xf32>
    %cst_46 = arith.constant 1.000000e+00 : f32
    %295 = vector.broadcast %cst_46 : f32 to vector<8x128xf32>
    %296 = arith.addf %295, %294 : vector<8x128xf32>
    %297 = arith.divf %295, %296 : vector<8x128xf32>
    %298 = vector.extract_strided_slice %297 {offsets = [0, 0], sizes = [8, 32], strides = [1, 1]} : vector<8x128xf32> to vector<8x32xf32>
    %299 = vector.extract_strided_slice %297 {offsets = [0, 32], sizes = [8, 32], strides = [1, 1]} : vector<8x128xf32> to vector<8x32xf32>
    %300 = vector.extract_strided_slice %297 {offsets = [0, 96], sizes = [8, 32], strides = [1, 1]} : vector<8x128xf32> to vector<8x32xf32>
    %301 = vector.extract_strided_slice %292 {offsets = [0, 64], sizes = [8, 32], strides = [1, 1]} : vector<8x128xf32> to vector<8x32xf32>
    %302 = math.tanh %301 : vector<8x32xf32>
    %303 = arith.mulf %299, %266 : vector<8x32xf32>
    %304 = arith.mulf %298, %302 : vector<8x32xf32>
    %305 = arith.addf %303, %304 : vector<8x32xf32>
    %306 = math.tanh %305 : vector<8x32xf32>
    %307 = arith.mulf %300, %306 : vector<8x32xf32>
    %308 = tpu.concatenate %307, %288 in 1 : vector<8x32xf32>, vector<8x32xf32> -> vector<8x64xf32>
    %309 = arith.truncf %308 : vector<8x64xf32> to vector<8x64xbf16>
    %cst_47 = arith.constant dense<0.000000e+00> : vector<8x128xf32>
    %310 = tpu.matmul %309, %9, %cst_47 {dimension_numbers = #tpu.dot_dimension_numbers<[1], [0], [0], [1], [0, 0, 1, 1], [], []>} : vector<8x64xbf16>, vector<64x128xbf16>, vector<8x128xf32> -> vector<8x128xf32>
    %311 = vector.broadcast %11 : vector<1x128xf32> to vector<8x128xf32>
    %312 = arith.addf %310, %311 : vector<8x128xf32>
    %313 = arith.negf %312 : vector<8x128xf32>
    %314 = math.exp %313 : vector<8x128xf32>
    %cst_48 = arith.constant 1.000000e+00 : f32
    %315 = vector.broadcast %cst_48 : f32 to vector<8x128xf32>
    %316 = arith.addf %315, %314 : vector<8x128xf32>
    %317 = arith.divf %315, %316 : vector<8x128xf32>
    %318 = vector.extract_strided_slice %317 {offsets = [0, 0], sizes = [8, 32], strides = [1, 1]} : vector<8x128xf32> to vector<8x32xf32>
    %319 = vector.extract_strided_slice %317 {offsets = [0, 32], sizes = [8, 32], strides = [1, 1]} : vector<8x128xf32> to vector<8x32xf32>
    %320 = vector.extract_strided_slice %317 {offsets = [0, 96], sizes = [8, 32], strides = [1, 1]} : vector<8x128xf32> to vector<8x32xf32>
    %321 = vector.extract_strided_slice %312 {offsets = [0, 64], sizes = [8, 32], strides = [1, 1]} : vector<8x128xf32> to vector<8x32xf32>
    %322 = math.tanh %321 : vector<8x32xf32>
    %323 = arith.mulf %319, %286 : vector<8x32xf32>
    %324 = arith.mulf %318, %322 : vector<8x32xf32>
    %325 = arith.addf %323, %324 : vector<8x32xf32>
    %326 = math.tanh %325 : vector<8x32xf32>
    %327 = arith.mulf %320, %326 : vector<8x32xf32>
    %328 = vector.extract_strided_slice %327 {offsets = [0, 0], sizes = [2, 32], strides = [1, 1]} : vector<8x32xf32> to vector<2x32xf32>
    %c0_49 = arith.constant 0 : index
    %c0_50 = arith.constant 0 : index
    %329 = vector.load %arg5[%c0_49, %c0_50] : memref<32x1xf32, #tpu.memory_space<vmem>>, vector<32x1xf32>
    %cst_51 = arith.constant dense<0.000000e+00> : vector<2x1xf32>
    %330 = tpu.matmul %328, %329, %cst_51 {dimension_numbers = #tpu.dot_dimension_numbers<[1], [0], [0], [1], [0, 0, 1, 1], [], []>} : vector<2x32xf32>, vector<32x1xf32>, vector<2x1xf32> -> vector<2x1xf32>
    %c0_52 = arith.constant 0 : index
    %c0_53 = arith.constant 0 : index
    %331 = vector.load %arg6[%c0_52, %c0_53] : memref<1x1xf32, #tpu.memory_space<vmem>>, vector<1x1xf32>
    %332 = vector.broadcast %331 : vector<1x1xf32> to vector<2x1xf32>
    %333 = arith.addf %330, %332 : vector<2x1xf32>
    %c0_54 = arith.constant 0 : index
    %c0_55 = arith.constant 0 : index
    %334 = vector.load %arg7[%c0_54, %c0_55] : memref<2x1xf32, #tpu.memory_space<vmem>>, vector<2x1xf32>
    tpu.vector_store %arg7[%c0_54, %c0_55], %333 {strides = array<i32>} : memref<2x1xf32, #tpu.memory_space<vmem>>, vector<2x1xf32>,
    return
  }
}

</mosaic_0001>

<llo_original>
// kernel: lstm_model_forward.1
$region0: #{lstm_model_forward.1}
  #allocation0 [shape = 'u32[]', space=smem, size = 0x4, offset = 0x4, fixed_abs, tag = 'smem constant byte address 0x4 - core index']
  #allocation1 [shape = 'u32[144,128]{1,0:T(1,128)}', space=vmem, size = 0x12000, scoped, tag = 'internal scratch']
  #allocation2 [shape = 'f32[1,1]{1,0:T(1,128)S(1)}', space=vmem, size = 0x200, scoped, tag = 'scoped memory for lstm_model_forward.1']
  %s0 = inlined_call_operand.vmem [shape: bf16[64,32], index: 0, kind: input, shape index: {}]
  %s1 = inlined_call_operand.vmem [shape: bf16[32,128], index: 1, kind: input, shape index: {}]
  %s2 = inlined_call_operand.vmem [shape: bf16[32,128], index: 2, kind: input, shape index: {}]
  %s3 = inlined_call_operand.vmem [shape: bf16[1,64,128], index: 3, kind: input, shape index: {}]
  %s4 = inlined_call_operand.vmem [shape: f32[2,1,128], index: 4, kind: input, shape index: {}]
  %s5 = inlined_call_operand.vmem [shape: f32[32,1], index: 5, kind: input, shape index: {}]
  %s6 = inlined_call_operand.<no memory space> [shape: f32[1,1], index: 6, kind: input, shape index: {}]
  %s7 = inlined_call_operand.vmem [shape: f32[2,1], index: 7, kind: output, shape index: {}]
  %s8 = sld [smem:[#allocation0]]
  $region38: #{lstm_model_forward.1} parent=0
    _
  %s10 = ssub.s32 1, %s8
  %s11 = scalar_select 0, %s10, %s8
  %v12 = vstv %s6
  %13 = vst [vmem:[#allocation2] sm:$0x1] %v12
  // Predicated region
  $region2: #{lstm_model_forward.1} parent=0 // pred_check
    _
  $region3: #{lstm_model_forward.1} parent=0 // pred_check_branch
    %15 = sbr.rel (0) target = $region5
  $region4: #{lstm_model_forward.1} parent=0 // pred_region
    _
  $region5: #{lstm_model_forward.1} parent=0 // pred_fallthru
    _
  // Predicated region
  $region6: #{lstm_model_forward.1} parent=0 // pred_check
    _
  $region7: #{lstm_model_forward.1} parent=0 // pred_check_branch
    %17 = sbr.rel (0) target = $region9
  $region8: #{lstm_model_forward.1} parent=0 // pred_region
    _
  $region9: #{lstm_model_forward.1} parent=0 // pred_fallthru
    _
  // Predicated region
  $region10: #{lstm_model_forward.1} parent=0 // pred_check
    _
  $region11: #{lstm_model_forward.1} parent=0 // pred_check_branch
    %19 = sbr.rel (0) target = $region13
  $region12: #{lstm_model_forward.1} parent=0 // pred_region
    _
  $region13: #{lstm_model_forward.1} parent=0 // pred_fallthru
    _
  // Predicated region
  $region14: #{lstm_model_forward.1} parent=0 // pred_check
    _
  $region15: #{lstm_model_forward.1} parent=0 // pred_check_branch
    %21 = sbr.rel (0) target = $region17
  $region16: #{lstm_model_forward.1} parent=0 // pred_region
    _
  $region17: #{lstm_model_forward.1} parent=0 // pred_fallthru
    _
  // Predicated region
  $region18: #{lstm_model_forward.1} parent=0 // pred_check
    _
  $region19: #{lstm_model_forward.1} parent=0 // pred_check_branch
    %23 = sbr.rel (0) target = $region21
  $region20: #{lstm_model_forward.1} parent=0 // pred_region
    _
  $region21: #{lstm_model_forward.1} parent=0 // pred_fallthru
    _
  // Predicated region
  $region22: #{lstm_model_forward.1} parent=0 // pred_check
    _
  $region23: #{lstm_model_forward.1} parent=0 // pred_check_branch
    %25 = sbr.rel (0) target = $region25
  $region24: #{lstm_model_forward.1} parent=0 // pred_region
    _
  $region25: #{lstm_model_forward.1} parent=0 // pred_fallthru
    _
  // Predicated region
  $region26: #{lstm_model_forward.1} parent=0 // pred_check
    _
  $region27: #{lstm_model_forward.1} parent=0 // pred_check_branch
    %27 = sbr.rel (0) target = $region29
  $region28: #{lstm_model_forward.1} parent=0 // pred_region
    _
  $region29: #{lstm_model_forward.1} parent=0 // pred_fallthru
    _
  %v29 = vld [vmem:[%s0] sm:$0xf]
  %v30 = vld [vmem:[%s0 + $0x4] sm:$0xf]
  %v31 = vld [vmem:[%s0 + $0x8] sm:$0xf]
  %v32 = vld [vmem:[%s0 + $0xc] sm:$0xf]
  %v33 = vld [vmem:[%s0 + $0x10] sm:$0xf]
  %v34 = vld [vmem:[%s0 + $0x14] sm:$0xf]
  %v35 = vld [vmem:[%s0 + $0x18] sm:$0xf]
  %v36 = vld [vmem:[%s0 + $0x1c] sm:$0xf]
  %v37 = vld [vmem:[%s1] sm:$0xf]
  %v38 = vld [vmem:[%s1 + $0x4] sm:$0xf]
  %v39 = vld [vmem:[%s1 + $0x8] sm:$0xf]
  %v40 = vld [vmem:[%s1 + $0xc] sm:$0xf]
  %v41 = vld [vmem:[%s4] sm:$0x1]
  %v43 = vlaneseq
  %v44 = vshrl.u32 %v43, 7
  %v45 = vsub.s32 0, %v44
  %v46 = vrot.slane %v41, %v45
  %v56 = vunpack.c.l.b16 %v29
  %v57 = vunpack.c.l.b16 %v30
  %v58 = vunpack.c.l.b16 %v31
  %v59 = vunpack.c.l.b16 %v32
  %v60 = vunpack.c.l.b16 %v33
  %v61 = vunpack.c.l.b16 %v34
  %v62 = vunpack.c.l.b16 %v35
  %v63 = vunpack.c.l.b16 %v36
  %v64 = vpack.c.b16 %v57, %v56
  %v65 = vpack.c.b16 %v59, %v58
  %v66 = vpack.c.b16 %v61, %v60
  %v67 = vpack.c.b16 %v63, %v62
  %v72 = vunpack.c.l.b16 %v37
  %v73 = vunpack.c.l.b16 %v38
  %v74 = vunpack.c.l.b16 %v39
  %v75 = vunpack.c.l.b16 %v40
  %v76 = vpack.c.b16 %v73, %v72
  %v77 = vpack.c.b16 %v75, %v74
  %vm80 = vcmask 261120
  %v82 = vsel %vm80, %v64, 0
  %v85 = vsel %vm80, %v65, 0
  %v88 = vsel %vm80, %v66, 0
  %v91 = vsel %vm80, %v67, 0
  %93 = vmatprep.subr.bf16.mxu0 0
  %94 = vmatpush1.bf16.msra.mxu0 %v76
  %95 = vmatprep.subr.bf16.mxu0 0
  %96 = vmatpush1.bf16.msra.mxu0 %v77
  %97 = vmatprep.subr.bf16.mxu0 0
  %98 = vmatpush1.bf16.msra.mxu0 0
  %99 = vmatprep.subr.bf16.mxu0 0
  %100 = vmatpush1.bf16.msra.mxu0 0
  %101 = vmatprep.subr.bf16.mxu0 0
  %102 = vmatpush1.bf16.msra.mxu0 0
  %103 = vmatprep.subr.bf16.mxu0 0
  %104 = vmatpush1.bf16.msra.mxu0 0
  %105 = vmatprep.subr.bf16.mxu0 0
  %106 = vmatpush1.bf16.msra.mxu0 0
  %107 = vmatprep.subr.bf16.mxu0 0
  %108 = vmatpush1.bf16.msra.mxu0 0
  %109 = vmatprep.subr.bf16.mxu0 0
  %110 = vmatpush1.bf16.msra.mxu0 0
  %111 = vmatprep.subr.bf16.mxu0 0
  %112 = vmatpush1.bf16.msra.mxu0 0
  %113 = vmatprep.subr.bf16.mxu0 0
  %114 = vmatpush1.bf16.msra.mxu0 0
  %115 = vmatprep.subr.bf16.mxu0 0
  %116 = vmatpush1.bf16.msra.mxu0 0
  %117 = vmatprep.subr.bf16.mxu0 0
  %118 = vmatpush1.bf16.msra.mxu0 0
  %119 = vmatprep.subr.bf16.mxu0 0
  %120 = vmatpush1.bf16.msra.mxu0 0
  %121 = vmatprep.subr.bf16.mxu0 0
  %122 = vmatpush1.bf16.msra.mxu0 0
  %123 = vmatprep.subr.bf16.mxu0 0
  %124 = vmatpush1.bf16.msra.mxu0 0
  %125 = vmatprep.mubr.bf16.mxu0 0
  %126 = vmatmul.mubr.bf16.gmra.mrb[0].mxu0 %v82
  %v127 = vpop.f32.mrb[0].mxu0
  %v128 = vadd.f32 %v46, %v127
  %v129 = vpop.f32.mrb[0].mxu0
  %v130 = vpop.f32.mrb[0].mxu0
  %v131 = vadd.f32 %v46, %v130
  %v132 = vpop.f32.mrb[0].mxu0
  %133 = vmatprep.mubr.bf16.mxu0 0
  %134 = vmatmul.mubr.bf16.gmra.mrb[0].mxu0 %v85
  %v135 = vpop.f32.mrb[0].mxu0
  %v136 = vadd.f32 %v46, %v135
  %v137 = vpop.f32.mrb[0].mxu0
  %v138 = vpop.f32.mrb[0].mxu0
  %v139 = vadd.f32 %v46, %v138
  %v140 = vpop.f32.mrb[0].mxu0
  %141 = vmatprep.mubr.bf16.mxu0 0
  %142 = vmatmul.mubr.bf16.gmra.mrb[0].mxu0 %v88
  %v143 = vpop.f32.mrb[0].mxu0
  %v144 = vadd.f32 %v46, %v143
  %v145 = vpop.f32.mrb[0].mxu0
  %v146 = vpop.f32.mrb[0].mxu0
  %v147 = vadd.f32 %v46, %v146
  %v148 = vpop.f32.mrb[0].mxu0
  %149 = vmatprep.mubr.bf16.mxu0 0
  %150 = vmatmul.mubr.bf16.gmra.mrb[0].mxu0 %v91
  %v151 = vpop.f32.mrb[0].mxu0
  %v152 = vadd.f32 %v46, %v151
  %v153 = vpop.f32.mrb[0].mxu0
  %v154 = vpop.f32.mrb[0].mxu0
  %v155 = vadd.f32 %v46, %v154
  %v156 = vpop.f32.mrb[0].mxu0
  %157 = vdwg.mxu0
  %v158 = vld [vmem:[%s2] sm:$0xf]
  %v159 = vld [vmem:[%s2 + $0x4] sm:$0xf]
  %v160 = vld [vmem:[%s2 + $0x8] sm:$0xf]
  %v161 = vld [vmem:[%s2 + $0xc] sm:$0xf]
  %v162 = vld [vmem:[%s3] sm:$0xf]
  %v163 = vld [vmem:[%s3 + $0x4] sm:$0xf]
  %v164 = vld [vmem:[%s3 + $0x8] sm:$0xf]
  %v165 = vld [vmem:[%s3 + $0xc] sm:$0xf]
  %v166 = vld [vmem:[%s3 + $0x10] sm:$0xf]
  %v167 = vld [vmem:[%s3 + $0x14] sm:$0xf]
  %v168 = vld [vmem:[%s3 + $0x18] sm:$0xf]
  %v169 = vld [vmem:[%s3 + $0x1c] sm:$0xf]
  %s170 = scalar_lea.vmem %s4, 1
  %v171 = vld [vmem:[%s170] sm:$0x1]
  %v176 = vunpack.c.l.b16 %v158
  %v177 = vunpack.c.l.b16 %v159
  %v178 = vunpack.c.l.b16 %v160
  %v179 = vunpack.c.l.b16 %v161
  %v180 = vpack.c.b16 %v177, %v176
  %v181 = vpack.c.b16 %v179, %v178
  %v185 = vsel %vm80, 0, 0
  %187 = vmatprep.subr.bf16.mxu0 0
  %188 = vmatpush1.bf16.msra.mxu0 %v180
  %189 = vmatprep.subr.bf16.mxu0 0
  %190 = vmatpush1.bf16.msra.mxu0 %v181
  %191 = vmatprep.subr.bf16.mxu0 0
  %192 = vmatpush1.bf16.msra.mxu0 0
  %193 = vmatprep.subr.bf16.mxu0 0
  %194 = vmatpush1.bf16.msra.mxu0 0
  %195 = vmatprep.subr.bf16.mxu0 0
  %196 = vmatpush1.bf16.msra.mxu0 0
  %197 = vmatprep.subr.bf16.mxu0 0
  %198 = vmatpush1.bf16.msra.mxu0 0
  %199 = vmatprep.subr.bf16.mxu0 0
  %200 = vmatpush1.bf16.msra.mxu0 0
  %201 = vmatprep.subr.bf16.mxu0 0
  %202 = vmatpush1.bf16.msra.mxu0 0
  %203 = vmatprep.subr.bf16.mxu0 0
  %204 = vmatpush1.bf16.msra.mxu0 0
  %205 = vmatprep.subr.bf16.mxu0 0
  %206 = vmatpush1.bf16.msra.mxu0 0
  %207 = vmatprep.subr.bf16.mxu0 0
  %208 = vmatpush1.bf16.msra.mxu0 0
  %209 = vmatprep.subr.bf16.mxu0 0
  %210 = vmatpush1.bf16.msra.mxu0 0
  %211 = vmatprep.subr.bf16.mxu0 0
  %212 = vmatpush1.bf16.msra.mxu0 0
  %213 = vmatprep.subr.bf16.mxu0 0
  %214 = vmatpush1.bf16.msra.mxu0 0
  %215 = vmatprep.subr.bf16.mxu0 0
  %216 = vmatpush1.bf16.msra.mxu0 0
  %217 = vmatprep.subr.bf16.mxu0 0
  %218 = vmatpush1.bf16.msra.mxu0 0
  %219 = vmatprep.mubr.bf16.mxu0 0
  %220 = vmatmul.mubr.bf16.gmra.mrb[0].mxu0 %v185
  %v221 = vpop.f32.mrb[0].mxu0
  %v222 = vadd.f32 0.0, %v221
  %v223 = vpop.f32.mrb[0].mxu0
  %v224 = vpop.f32.mrb[0].mxu0
  %v225 = vpop.f32.mrb[0].mxu0
  %226 = vdwg.mxu0
  %v227 = vadd.f32 %v128, %v222
  %v228 = vxor.u32 %v227, 2147483648
  %v229 = vmul.f32 %v228, 1.442695
  %v230 = vpow.pop %v229
  %v231 = vadd.f32 %v230, 1.0
  %v232 = vrcp.pop %v231
  %v233 = vmul.f32 1.0, %v232
  %v234 = vtanh.pop %v227
  %v235 = vmul.f32 %v233, 0.0
  %237 = vrot.lane.b32.xlu0 %v234, 64
  %v238 = vpop.permute.xlu0 %237
  %v240 = vmul.f32 %v233, %v238
  %242 = vrot.lane.b32.xlu0 %v240, 32
  %v243 = vpop.permute.xlu0 %242
  %v245 = vadd.f32 %v235, %v243
  %v246 = vtanh.pop %v245
  %248 = vrot.lane.b32.xlu0 %v246, 64
  %v249 = vpop.permute.xlu0 %248
  %v251 = vmul.f32 %v233, %v249
  %253 = vrot.lane.b32.xlu0 %v251, 32
  %v254 = vpop.permute.xlu0 %253
  %v256 = vsel %vm80, %v254, 0.0
  %v257 = vpack.c.bf16 %v256, %v256
  %v259 = vlaneseq
  %v260 = vshrl.u32 %v259, 7
  %v261 = vsub.s32 0, %v260
  %v262 = vrot.slane %v171, %v261
  %v272 = vunpack.c.l.b16 %v162
  %v273 = vunpack.c.l.b16 %v163
  %v274 = vunpack.c.l.b16 %v164
  %v275 = vunpack.c.l.b16 %v165
  %v276 = vunpack.c.l.b16 %v166
  %v277 = vunpack.c.l.b16 %v167
  %v278 = vunpack.c.l.b16 %v168
  %v279 = vunpack.c.l.b16 %v169
  %v280 = vpack.c.b16 %v273, %v272
  %v281 = vpack.c.b16 %v275, %v274
  %v282 = vpack.c.b16 %v277, %v276
  %v283 = vpack.c.b16 %v279, %v278
  %vm288 = vcmask 523264
  %v290 = vsel %vm288, %v257, 0
  %292 = vmatprep.subr.bf16.mxu0 0
  %293 = vmatpush1.bf16.msra.mxu0 %v280
  %294 = vmatprep.subr.bf16.mxu0 0
  %295 = vmatpush1.bf16.msra.mxu0 %v281
  %296 = vmatprep.subr.bf16.mxu0 0
  %297 = vmatpush1.bf16.msra.mxu0 %v282
  %298 = vmatprep.subr.bf16.mxu0 0
  %299 = vmatpush1.bf16.msra.mxu0 %v283
  %300 = vmatprep.subr.bf16.mxu0 0
  %301 = vmatpush1.bf16.msra.mxu0 0
  %302 = vmatprep.subr.bf16.mxu0 0
  %303 = vmatpush1.bf16.msra.mxu0 0
  %304 = vmatprep.subr.bf16.mxu0 0
  %305 = vmatpush1.bf16.msra.mxu0 0
  %306 = vmatprep.subr.bf16.mxu0 0
  %307 = vmatpush1.bf16.msra.mxu0 0
  %308 = vmatprep.subr.bf16.mxu0 0
  %309 = vmatpush1.bf16.msra.mxu0 0
  %310 = vmatprep.subr.bf16.mxu0 0
  %311 = vmatpush1.bf16.msra.mxu0 0
  %312 = vmatprep.subr.bf16.mxu0 0
  %313 = vmatpush1.bf16.msra.mxu0 0
  %314 = vmatprep.subr.bf16.mxu0 0
  %315 = vmatpush1.bf16.msra.mxu0 0
  %316 = vmatprep.subr.bf16.mxu0 0
  %317 = vmatpush1.bf16.msra.mxu0 0
  %318 = vmatprep.subr.bf16.mxu0 0
  %319 = vmatpush1.bf16.msra.mxu0 0
  %320 = vmatprep.subr.bf16.mxu0 0
  %321 = vmatpush1.bf16.msra.mxu0 0
  %322 = vmatprep.subr.bf16.mxu0 0
  %323 = vmatpush1.bf16.msra.mxu0 0
  %324 = vmatprep.mubr.bf16.mxu0 0
  %325 = vmatmul.mubr.bf16.gmra.mrb[0].mxu0 %v290
  %v326 = vpop.f32.mrb[0].mxu0
  %v327 = vadd.f32 %v262, %v326
  %v328 = vpop.f32.mrb[0].mxu0
  %v329 = vpop.f32.mrb[0].mxu0
  %v330 = vpop.f32.mrb[0].mxu0
  %331 = vdwg.mxu0
  %v332 = vxor.u32 %v327, 2147483648
  %v333 = vmul.f32 %v332, 1.442695
  %v334 = vpow.pop %v333
  %v335 = vadd.f32 %v334, 1.0
  %v336 = vrcp.pop %v335
  %v337 = vmul.f32 1.0, %v336
  %v338 = vtanh.pop %v327
  %v339 = vmul.f32 %v337, 0.0
  %341 = vrot.lane.b32.xlu0 %v338, 64
  %v342 = vpop.permute.xlu0 %341
  %v344 = vmul.f32 %v337, %v342
  %346 = vrot.lane.b32.xlu0 %v344, 32
  %v347 = vpop.permute.xlu0 %346
  %v349 = vadd.f32 %v339, %v347
  %v350 = vtanh.pop %v349
  %352 = vrot.lane.b32.xlu0 %v350, 64
  %v353 = vpop.permute.xlu0 %352
  %v355 = vmul.f32 %v337, %v353
  %v356 = vpack.c.bf16 %v251, %v251
  %358 = vrot.lane.b32.xlu0 %v356, 32
  %v359 = vpop.permute.xlu0 %358
  %v361 = vsel %vm80, %v359, 0
  %363 = vmatprep.subr.bf16.mxu0 0
  %364 = vmatpush1.bf16.msra.mxu0 %v180
  %365 = vmatprep.subr.bf16.mxu0 0
  %366 = vmatpush1.bf16.msra.mxu0 %v181
  %367 = vmatprep.subr.bf16.mxu0 0
  %368 = vmatpush1.bf16.msra.mxu0 0
  %369 = vmatprep.subr.bf16.mxu0 0
  %370 = vmatpush1.bf16.msra.mxu0 0
  %371 = vmatprep.subr.bf16.mxu0 0
  %372 = vmatpush1.bf16.msra.mxu0 0
  %373 = vmatprep.subr.bf16.mxu0 0
  %374 = vmatpush1.bf16.msra.mxu0 0
  %375 = vmatprep.subr.bf16.mxu0 0
  %376 = vmatpush1.bf16.msra.mxu0 0
  %377 = vmatprep.subr.bf16.mxu0 0
  %378 = vmatpush1.bf16.msra.mxu0 0
  %379 = vmatprep.subr.bf16.mxu0 0
  %380 = vmatpush1.bf16.msra.mxu0 0
  %381 = vmatprep.subr.bf16.mxu0 0
  %382 = vmatpush1.bf16.msra.mxu0 0
  %383 = vmatprep.subr.bf16.mxu0 0
  %384 = vmatpush1.bf16.msra.mxu0 0
  %385 = vmatprep.subr.bf16.mxu0 0
  %386 = vmatpush1.bf16.msra.mxu0 0
  %387 = vmatprep.subr.bf16.mxu0 0
  %388 = vmatpush1.bf16.msra.mxu0 0
  %389 = vmatprep.subr.bf16.mxu0 0
  %390 = vmatpush1.bf16.msra.mxu0 0
  %391 = vmatprep.subr.bf16.mxu0 0
  %392 = vmatpush1.bf16.msra.mxu0 0
  %393 = vmatprep.subr.bf16.mxu0 0
  %394 = vmatpush1.bf16.msra.mxu0 0
  %395 = vmatprep.mubr.bf16.mxu0 0
  %396 = vmatmul.mubr.bf16.gmra.mrb[0].mxu0 %v361
  %v397 = vpop.f32.mrb[0].mxu0
  %v398 = vadd.f32 0.0, %v397
  %v399 = vpop.f32.mrb[0].mxu0
  %v400 = vpop.f32.mrb[0].mxu0
  %v401 = vpop.f32.mrb[0].mxu0
  %402 = vdwg.mxu0
  %v403 = vadd.f32 %v131, %v398
  %v404 = vxor.u32 %v403, 2147483648
  %v405 = vmul.f32 %v404, 1.442695
  %v406 = vpow.pop %v405
  %v407 = vadd.f32 %v406, 1.0
  %v408 = vrcp.pop %v407
  %v409 = vmul.f32 1.0, %v408
  %v410 = vtanh.pop %v403
  %v411 = vmul.f32 %v409, %v245
  %413 = vrot.lane.b32.xlu0 %v410, 64
  %v414 = vpop.permute.xlu0 %413
  %v416 = vmul.f32 %v409, %v414
  %418 = vrot.lane.b32.xlu0 %v416, 32
  %v419 = vpop.permute.xlu0 %418
  %v421 = vadd.f32 %v411, %v419
  %v422 = vtanh.pop %v421
  %424 = vrot.lane.b32.xlu0 %v422, 64
  %v425 = vpop.permute.xlu0 %424
  %v427 = vmul.f32 %v409, %v425
  %429 = vrot.lane.b32.xlu0 %v427, 32
  %v430 = vpop.permute.xlu0 %429
  %433 = vrot.lane.b32.xlu0 %v355, 64
  %v434 = vpop.permute.xlu0 %433
  %v436 = vsel %vm80, %v430, %v434
  %v437 = vpack.c.bf16 %v436, %v436
  %v439 = vsel %vm288, %v437, 0
  %441 = vmatprep.subr.bf16.mxu0 0
  %442 = vmatpush1.bf16.msra.mxu0 %v280
  %443 = vmatprep.subr.bf16.mxu0 0
  %444 = vmatpush1.bf16.msra.mxu0 %v281
  %445 = vmatprep.subr.bf16.mxu0 0
  %446 = vmatpush1.bf16.msra.mxu0 %v282
  %447 = vmatprep.subr.bf16.mxu0 0
  %448 = vmatpush1.bf16.msra.mxu0 %v283
  %449 = vmatprep.subr.bf16.mxu0 0
  %450 = vmatpush1.bf16.msra.mxu0 0
  %451 = vmatprep.subr.bf16.mxu0 0
  %452 = vmatpush1.bf16.msra.mxu0 0
  %453 = vmatprep.subr.bf16.mxu0 0
  %454 = vmatpush1.bf16.msra.mxu0 0
  %455 = vmatprep.subr.bf16.mxu0 0
  %456 = vmatpush1.bf16.msra.mxu0 0
  %457 = vmatprep.subr.bf16.mxu0 0
  %458 = vmatpush1.bf16.msra.mxu0 0
  %459 = vmatprep.subr.bf16.mxu0 0
  %460 = vmatpush1.bf16.msra.mxu0 0
  %461 = vmatprep.subr.bf16.mxu0 0
  %462 = vmatpush1.bf16.msra.mxu0 0
  %463 = vmatprep.subr.bf16.mxu0 0
  %464 = vmatpush1.bf16.msra.mxu0 0
  %465 = vmatprep.subr.bf16.mxu0 0
  %466 = vmatpush1.bf16.msra.mxu0 0
  %467 = vmatprep.subr.bf16.mxu0 0
  %468 = vmatpush1.bf16.msra.mxu0 0
  %469 = vmatprep.subr.bf16.mxu0 0
  %470 = vmatpush1.bf16.msra.mxu0 0
  %471 = vmatprep.subr.bf16.mxu0 0
  %472 = vmatpush1.bf16.msra.mxu0 0
  %473 = vmatprep.mubr.bf16.mxu0 0
  %474 = vmatmul.mubr.bf16.gmra.mrb[0].mxu0 %v439
  %v475 = vpop.f32.mrb[0].mxu0
  %v476 = vadd.f32 %v262, %v475
  %v477 = vpop.f32.mrb[0].mxu0
  %v478 = vpop.f32.mrb[0].mxu0
  %v479 = vpop.f32.mrb[0].mxu0
  %480 = vdwg.mxu0
  %v481 = vxor.u32 %v476, 2147483648
  %v482 = vmul.f32 %v481, 1.442695
  %v483 = vpow.pop %v482
  %v484 = vadd.f32 %v483, 1.0
  %v485 = vrcp.pop %v484
  %v486 = vmul.f32 1.0, %v485
  %v487 = vtanh.pop %v476
  %v488 = vmul.f32 %v486, %v349
  %490 = vrot.lane.b32.xlu0 %v487, 64
  %v491 = vpop.permute.xlu0 %490
  %v493 = vmul.f32 %v486, %v491
  %495 = vrot.lane.b32.xlu0 %v493, 32
  %v496 = vpop.permute.xlu0 %495
  %v498 = vadd.f32 %v488, %v496
  %v499 = vtanh.pop %v498
  %501 = vrot.lane.b32.xlu0 %v499, 64
  %v502 = vpop.permute.xlu0 %501
  %v504 = vmul.f32 %v486, %v502
  %v505 = vpack.c.bf16 %v427, %v427
  %507 = vrot.lane.b32.xlu0 %v505, 32
  %v508 = vpop.permute.xlu0 %507
  %v510 = vsel %vm80, %v508, 0
  %512 = vmatprep.subr.bf16.mxu0 0
  %513 = vmatpush1.bf16.msra.mxu0 %v180
  %514 = vmatprep.subr.bf16.mxu0 0
  %515 = vmatpush1.bf16.msra.mxu0 %v181
  %516 = vmatprep.subr.bf16.mxu0 0
  %517 = vmatpush1.bf16.msra.mxu0 0
  %518 = vmatprep.subr.bf16.mxu0 0
  %519 = vmatpush1.bf16.msra.mxu0 0
  %520 = vmatprep.subr.bf16.mxu0 0
  %521 = vmatpush1.bf16.msra.mxu0 0
  %522 = vmatprep.subr.bf16.mxu0 0
  %523 = vmatpush1.bf16.msra.mxu0 0
  %524 = vmatprep.subr.bf16.mxu0 0
  %525 = vmatpush1.bf16.msra.mxu0 0
  %526 = vmatprep.subr.bf16.mxu0 0
  %527 = vmatpush1.bf16.msra.mxu0 0
  %528 = vmatprep.subr.bf16.mxu0 0
  %529 = vmatpush1.bf16.msra.mxu0 0
  %530 = vmatprep.subr.bf16.mxu0 0
  %531 = vmatpush1.bf16.msra.mxu0 0
  %532 = vmatprep.subr.bf16.mxu0 0
  %533 = vmatpush1.bf16.msra.mxu0 0
  %534 = vmatprep.subr.bf16.mxu0 0
  %535 = vmatpush1.bf16.msra.mxu0 0
  %536 = vmatprep.subr.bf16.mxu0 0
  %537 = vmatpush1.bf16.msra.mxu0 0
  %538 = vmatprep.subr.bf16.mxu0 0
  %539 = vmatpush1.bf16.msra.mxu0 0
  %540 = vmatprep.subr.bf16.mxu0 0
  %541 = vmatpush1.bf16.msra.mxu0 0
  %542 = vmatprep.subr.bf16.mxu0 0
  %543 = vmatpush1.bf16.msra.mxu0 0
  %544 = vmatprep.mubr.bf16.mxu0 0
  %545 = vmatmul.mubr.bf16.gmra.mrb[0].mxu0 %v510
  %v546 = vpop.f32.mrb[0].mxu0
  %v547 = vadd.f32 0.0, %v546
  %v548 = vpop.f32.mrb[0].mxu0
  %v549 = vpop.f32.mrb[0].mxu0
  %v550 = vpop.f32.mrb[0].mxu0
  %551 = vdwg.mxu0
  %v552 = vadd.f32 %v136, %v547
  %v553 = vxor.u32 %v552, 2147483648
  %v554 = vmul.f32 %v553, 1.442695
  %v555 = vpow.pop %v554
  %v556 = vadd.f32 %v555, 1.0
  %v557 = vrcp.pop %v556
  %v558 = vmul.f32 1.0, %v557
  %v559 = vtanh.pop %v552
  %v560 = vmul.f32 %v558, %v421
  %562 = vrot.lane.b32.xlu0 %v559, 64
  %v563 = vpop.permute.xlu0 %562
  %v565 = vmul.f32 %v558, %v563
  %567 = vrot.lane.b32.xlu0 %v565, 32
  %v568 = vpop.permute.xlu0 %567
  %v570 = vadd.f32 %v560, %v568
  %v571 = vtanh.pop %v570
  %573 = vrot.lane.b32.xlu0 %v571, 64
  %v574 = vpop.permute.xlu0 %573
  %v576 = vmul.f32 %v558, %v574
  %578 = vrot.lane.b32.xlu0 %v576, 32
  %v579 = vpop.permute.xlu0 %578
  %582 = vrot.lane.b32.xlu0 %v504, 64
  %v583 = vpop.permute.xlu0 %582
  %v585 = vsel %vm80, %v579, %v583
  %v586 = vpack.c.bf16 %v585, %v585
  %v588 = vsel %vm288, %v586, 0
  %590 = vmatprep.subr.bf16.mxu0 0
  %591 = vmatpush1.bf16.msra.mxu0 %v280
  %592 = vmatprep.subr.bf16.mxu0 0
  %593 = vmatpush1.bf16.msra.mxu0 %v281
  %594 = vmatprep.subr.bf16.mxu0 0
  %595 = vmatpush1.bf16.msra.mxu0 %v282
  %596 = vmatprep.subr.bf16.mxu0 0
  %597 = vmatpush1.bf16.msra.mxu0 %v283
  %598 = vmatprep.subr.bf16.mxu0 0
  %599 = vmatpush1.bf16.msra.mxu0 0
  %600 = vmatprep.subr.bf16.mxu0 0
  %601 = vmatpush1.bf16.msra.mxu0 0
  %602 = vmatprep.subr.bf16.mxu0 0
  %603 = vmatpush1.bf16.msra.mxu0 0
  %604 = vmatprep.subr.bf16.mxu0 0
  %605 = vmatpush1.bf16.msra.mxu0 0
  %606 = vmatprep.subr.bf16.mxu0 0
  %607 = vmatpush1.bf16.msra.mxu0 0
  %608 = vmatprep.subr.bf16.mxu0 0
  %609 = vmatpush1.bf16.msra.mxu0 0
  %610 = vmatprep.subr.bf16.mxu0 0
  %611 = vmatpush1.bf16.msra.mxu0 0
  %612 = vmatprep.subr.bf16.mxu0 0
  %613 = vmatpush1.bf16.msra.mxu0 0
  %614 = vmatprep.subr.bf16.mxu0 0
  %615 = vmatpush1.bf16.msra.mxu0 0
  %616 = vmatprep.subr.bf16.mxu0 0
  %617 = vmatpush1.bf16.msra.mxu0 0
  %618 = vmatprep.subr.bf16.mxu0 0
  %619 = vmatpush1.bf16.msra.mxu0 0
  %620 = vmatprep.subr.bf16.mxu0 0
  %621 = vmatpush1.bf16.msra.mxu0 0
  %622 = vmatprep.mubr.bf16.mxu0 0
  %623 = vmatmul.mubr.bf16.gmra.mrb[0].mxu0 %v588
  %v624 = vpop.f32.mrb[0].mxu0
  %v625 = vadd.f32 %v262, %v624
  %v626 = vpop.f32.mrb[0].mxu0
  %v627 = vpop.f32.mrb[0].mxu0
  %v628 = vpop.f32.mrb[0].mxu0
  %629 = vdwg.mxu0
  %v630 = vxor.u32 %v625, 2147483648
  %v631 = vmul.f32 %v630, 1.442695
  %v632 = vpow.pop %v631
  %v633 = vadd.f32 %v632, 1.0
  %v634 = vrcp.pop %v633
  %v635 = vmul.f32 1.0, %v634
  %v636 = vtanh.pop %v625
  %v637 = vmul.f32 %v635, %v498
  %639 = vrot.lane.b32.xlu0 %v636, 64
  %v640 = vpop.permute.xlu0 %639
  %v642 = vmul.f32 %v635, %v640
  %644 = vrot.lane.b32.xlu0 %v642, 32
  %v645 = vpop.permute.xlu0 %644
  %v647 = vadd.f32 %v637, %v645
  %v648 = vtanh.pop %v647
  %650 = vrot.lane.b32.xlu0 %v648, 64
  %v651 = vpop.permute.xlu0 %650
  %v653 = vmul.f32 %v635, %v651
  %v654 = vpack.c.bf16 %v576, %v576
  %656 = vrot.lane.b32.xlu0 %v654, 32
  %v657 = vpop.permute.xlu0 %656
  %v659 = vsel %vm80, %v657, 0
  %661 = vmatprep.subr.bf16.mxu0 0
  %662 = vmatpush1.bf16.msra.mxu0 %v180
  %663 = vmatprep.subr.bf16.mxu0 0
  %664 = vmatpush1.bf16.msra.mxu0 %v181
  %665 = vmatprep.subr.bf16.mxu0 0
  %666 = vmatpush1.bf16.msra.mxu0 0
  %667 = vmatprep.subr.bf16.mxu0 0
  %668 = vmatpush1.bf16.msra.mxu0 0
  %669 = vmatprep.subr.bf16.mxu0 0
  %670 = vmatpush1.bf16.msra.mxu0 0
  %671 = vmatprep.subr.bf16.mxu0 0
  %672 = vmatpush1.bf16.msra.mxu0 0
  %673 = vmatprep.subr.bf16.mxu0 0
  %674 = vmatpush1.bf16.msra.mxu0 0
  %675 = vmatprep.subr.bf16.mxu0 0
  %676 = vmatpush1.bf16.msra.mxu0 0
  %677 = vmatprep.subr.bf16.mxu0 0
  %678 = vmatpush1.bf16.msra.mxu0 0
  %679 = vmatprep.subr.bf16.mxu0 0
  %680 = vmatpush1.bf16.msra.mxu0 0
  %681 = vmatprep.subr.bf16.mxu0 0
  %682 = vmatpush1.bf16.msra.mxu0 0
  %683 = vmatprep.subr.bf16.mxu0 0
  %684 = vmatpush1.bf16.msra.mxu0 0
  %685 = vmatprep.subr.bf16.mxu0 0
  %686 = vmatpush1.bf16.msra.mxu0 0
  %687 = vmatprep.subr.bf16.mxu0 0
  %688 = vmatpush1.bf16.msra.mxu0 0
  %689 = vmatprep.subr.bf16.mxu0 0
  %690 = vmatpush1.bf16.msra.mxu0 0
  %691 = vmatprep.subr.bf16.mxu0 0
  %692 = vmatpush1.bf16.msra.mxu0 0
  %693 = vmatprep.mubr.bf16.mxu0 0
  %694 = vmatmul.mubr.bf16.gmra.mrb[0].mxu0 %v659
  %v695 = vpop.f32.mrb[0].mxu0
  %v696 = vadd.f32 0.0, %v695
  %v697 = vpop.f32.mrb[0].mxu0
  %v698 = vpop.f32.mrb[0].mxu0
  %v699 = vpop.f32.mrb[0].mxu0
  %700 = vdwg.mxu0
  %v701 = vadd.f32 %v139, %v696
  %v702 = vxor.u32 %v701, 2147483648
  %v703 = vmul.f32 %v702, 1.442695
  %v704 = vpow.pop %v703
  %v705 = vadd.f32 %v704, 1.0
  %v706 = vrcp.pop %v705
  %v707 = vmul.f32 1.0, %v706
  %v708 = vtanh.pop %v701
  %v709 = vmul.f32 %v707, %v570
  %711 = vrot.lane.b32.xlu0 %v708, 64
  %v712 = vpop.permute.xlu0 %711
  %v714 = vmul.f32 %v707, %v712
  %716 = vrot.lane.b32.xlu0 %v714, 32
  %v717 = vpop.permute.xlu0 %716
  %v719 = vadd.f32 %v709, %v717
  %v720 = vtanh.pop %v719
  %722 = vrot.lane.b32.xlu0 %v720, 64
  %v723 = vpop.permute.xlu0 %722
  %v725 = vmul.f32 %v707, %v723
  %727 = vrot.lane.b32.xlu0 %v725, 32
  %v728 = vpop.permute.xlu0 %727
  %731 = vrot.lane.b32.xlu0 %v653, 64
  %v732 = vpop.permute.xlu0 %731
  %v734 = vsel %vm80, %v728, %v732
  %v735 = vpack.c.bf16 %v734, %v734
  %v737 = vsel %vm288, %v735, 0
  %739 = vmatprep.subr.bf16.mxu0 0
  %740 = vmatpush1.bf16.msra.mxu0 %v280
  %741 = vmatprep.subr.bf16.mxu0 0
  %742 = vmatpush1.bf16.msra.mxu0 %v281
  %743 = vmatprep.subr.bf16.mxu0 0
  %744 = vmatpush1.bf16.msra.mxu0 %v282
  %745 = vmatprep.subr.bf16.mxu0 0
  %746 = vmatpush1.bf16.msra.mxu0 %v283
  %747 = vmatprep.subr.bf16.mxu0 0
  %748 = vmatpush1.bf16.msra.mxu0 0
  %749 = vmatprep.subr.bf16.mxu0 0
  %750 = vmatpush1.bf16.msra.mxu0 0
  %751 = vmatprep.subr.bf16.mxu0 0
  %752 = vmatpush1.bf16.msra.mxu0 0
  %753 = vmatprep.subr.bf16.mxu0 0
  %754 = vmatpush1.bf16.msra.mxu0 0
  %755 = vmatprep.subr.bf16.mxu0 0
  %756 = vmatpush1.bf16.msra.mxu0 0
  %757 = vmatprep.subr.bf16.mxu0 0
  %758 = vmatpush1.bf16.msra.mxu0 0
  %759 = vmatprep.subr.bf16.mxu0 0
  %760 = vmatpush1.bf16.msra.mxu0 0
  %761 = vmatprep.subr.bf16.mxu0 0
  %762 = vmatpush1.bf16.msra.mxu0 0
  %763 = vmatprep.subr.bf16.mxu0 0
  %764 = vmatpush1.bf16.msra.mxu0 0
  %765 = vmatprep.subr.bf16.mxu0 0
  %766 = vmatpush1.bf16.msra.mxu0 0
  %767 = vmatprep.subr.bf16.mxu0 0
  %768 = vmatpush1.bf16.msra.mxu0 0
  %769 = vmatprep.subr.bf16.mxu0 0
  %770 = vmatpush1.bf16.msra.mxu0 0
  %771 = vmatprep.mubr.bf16.mxu0 0
  %772 = vmatmul.mubr.bf16.gmra.mrb[0].mxu0 %v737
  %v773 = vpop.f32.mrb[0].mxu0
  %v774 = vadd.f32 %v262, %v773
  %v775 = vpop.f32.mrb[0].mxu0
  %v776 = vpop.f32.mrb[0].mxu0
  %v777 = vpop.f32.mrb[0].mxu0
  %778 = vdwg.mxu0
  %v779 = vxor.u32 %v774, 2147483648
  %v780 = vmul.f32 %v779, 1.442695
  %v781 = vpow.pop %v780
  %v782 = vadd.f32 %v781, 1.0
  %v783 = vrcp.pop %v782
  %v784 = vmul.f32 1.0, %v783
  %v785 = vtanh.pop %v774
  %v786 = vmul.f32 %v784, %v647
  %788 = vrot.lane.b32.xlu0 %v785, 64
  %v789 = vpop.permute.xlu0 %788
  %v791 = vmul.f32 %v784, %v789
  %793 = vrot.lane.b32.xlu0 %v791, 32
  %v794 = vpop.permute.xlu0 %793
  %v796 = vadd.f32 %v786, %v794
  %v797 = vtanh.pop %v796
  %799 = vrot.lane.b32.xlu0 %v797, 64
  %v800 = vpop.permute.xlu0 %799
  %v802 = vmul.f32 %v784, %v800
  %v803 = vpack.c.bf16 %v725, %v725
  %805 = vrot.lane.b32.xlu0 %v803, 32
  %v806 = vpop.permute.xlu0 %805
  %v808 = vsel %vm80, %v806, 0
  %810 = vmatprep.subr.bf16.mxu0 0
  %811 = vmatpush1.bf16.msra.mxu0 %v180
  %812 = vmatprep.subr.bf16.mxu0 0
  %813 = vmatpush1.bf16.msra.mxu0 %v181
  %814 = vmatprep.subr.bf16.mxu0 0
  %815 = vmatpush1.bf16.msra.mxu0 0
  %816 = vmatprep.subr.bf16.mxu0 0
  %817 = vmatpush1.bf16.msra.mxu0 0
  %818 = vmatprep.subr.bf16.mxu0 0
  %819 = vmatpush1.bf16.msra.mxu0 0
  %820 = vmatprep.subr.bf16.mxu0 0
  %821 = vmatpush1.bf16.msra.mxu0 0
  %822 = vmatprep.subr.bf16.mxu0 0
  %823 = vmatpush1.bf16.msra.mxu0 0
  %824 = vmatprep.subr.bf16.mxu0 0
  %825 = vmatpush1.bf16.msra.mxu0 0
  %826 = vmatprep.subr.bf16.mxu0 0
  %827 = vmatpush1.bf16.msra.mxu0 0
  %828 = vmatprep.subr.bf16.mxu0 0
  %829 = vmatpush1.bf16.msra.mxu0 0
  %830 = vmatprep.subr.bf16.mxu0 0
  %831 = vmatpush1.bf16.msra.mxu0 0
  %832 = vmatprep.subr.bf16.mxu0 0
  %833 = vmatpush1.bf16.msra.mxu0 0
  %834 = vmatprep.subr.bf16.mxu0 0
  %835 = vmatpush1.bf16.msra.mxu0 0
  %836 = vmatprep.subr.bf16.mxu0 0
  %837 = vmatpush1.bf16.msra.mxu0 0
  %838 = vmatprep.subr.bf16.mxu0 0
  %839 = vmatpush1.bf16.msra.mxu0 0
  %840 = vmatprep.subr.bf16.mxu0 0
  %841 = vmatpush1.bf16.msra.mxu0 0
  %842 = vmatprep.mubr.bf16.mxu0 0
  %843 = vmatmul.mubr.bf16.gmra.mrb[0].mxu0 %v808
  %v844 = vpop.f32.mrb[0].mxu0
  %v845 = vadd.f32 0.0, %v844
  %v846 = vpop.f32.mrb[0].mxu0
  %v847 = vpop.f32.mrb[0].mxu0
  %v848 = vpop.f32.mrb[0].mxu0
  %849 = vdwg.mxu0
  %v850 = vadd.f32 %v144, %v845
  %v851 = vxor.u32 %v850, 2147483648
  %v852 = vmul.f32 %v851, 1.442695
  %v853 = vpow.pop %v852
  %v854 = vadd.f32 %v853, 1.0
  %v855 = vrcp.pop %v854
  %v856 = vmul.f32 1.0, %v855
  %v857 = vtanh.pop %v850
  %v858 = vmul.f32 %v856, %v719
  %860 = vrot.lane.b32.xlu0 %v857, 64
  %v861 = vpop.permute.xlu0 %860
  %v863 = vmul.f32 %v856, %v861
  %865 = vrot.lane.b32.xlu0 %v863, 32
  %v866 = vpop.permute.xlu0 %865
  %v868 = vadd.f32 %v858, %v866
  %v869 = vtanh.pop %v868
  %871 = vrot.lane.b32.xlu0 %v869, 64
  %v872 = vpop.permute.xlu0 %871
  %v874 = vmul.f32 %v856, %v872
  %876 = vrot.lane.b32.xlu0 %v874, 32
  %v877 = vpop.permute.xlu0 %876
  %880 = vrot.lane.b32.xlu0 %v802, 64
  %v881 = vpop.permute.xlu0 %880
  %v883 = vsel %vm80, %v877, %v881
  %v884 = vpack.c.bf16 %v883, %v883
  %v886 = vsel %vm288, %v884, 0
  %888 = vmatprep.subr.bf16.mxu0 0
  %889 = vmatpush1.bf16.msra.mxu0 %v280
  %890 = vmatprep.subr.bf16.mxu0 0
  %891 = vmatpush1.bf16.msra.mxu0 %v281
  %892 = vmatprep.subr.bf16.mxu0 0
  %893 = vmatpush1.bf16.msra.mxu0 %v282
  %894 = vmatprep.subr.bf16.mxu0 0
  %895 = vmatpush1.bf16.msra.mxu0 %v283
  %896 = vmatprep.subr.bf16.mxu0 0
  %897 = vmatpush1.bf16.msra.mxu0 0
  %898 = vmatprep.subr.bf16.mxu0 0
  %899 = vmatpush1.bf16.msra.mxu0 0
  %900 = vmatprep.subr.bf16.mxu0 0
  %901 = vmatpush1.bf16.msra.mxu0 0
  %902 = vmatprep.subr.bf16.mxu0 0
  %903 = vmatpush1.bf16.msra.mxu0 0
  %904 = vmatprep.subr.bf16.mxu0 0
  %905 = vmatpush1.bf16.msra.mxu0 0
  %906 = vmatprep.subr.bf16.mxu0 0
  %907 = vmatpush1.bf16.msra.mxu0 0
  %908 = vmatprep.subr.bf16.mxu0 0
  %909 = vmatpush1.bf16.msra.mxu0 0
  %910 = vmatprep.subr.bf16.mxu0 0
  %911 = vmatpush1.bf16.msra.mxu0 0
  %912 = vmatprep.subr.bf16.mxu0 0
  %913 = vmatpush1.bf16.msra.mxu0 0
  %914 = vmatprep.subr.bf16.mxu0 0
  %915 = vmatpush1.bf16.msra.mxu0 0
  %916 = vmatprep.subr.bf16.mxu0 0
  %917 = vmatpush1.bf16.msra.mxu0 0
  %918 = vmatprep.subr.bf16.mxu0 0
  %919 = vmatpush1.bf16.msra.mxu0 0
  %920 = vmatprep.mubr.bf16.mxu0 0
  %921 = vmatmul.mubr.bf16.gmra.mrb[0].mxu0 %v886
  %v922 = vpop.f32.mrb[0].mxu0
  %v923 = vadd.f32 %v262, %v922
  %v924 = vpop.f32.mrb[0].mxu0
  %v925 = vpop.f32.mrb[0].mxu0
  %v926 = vpop.f32.mrb[0].mxu0
  %927 = vdwg.mxu0
  %v928 = vxor.u32 %v923, 2147483648
  %v929 = vmul.f32 %v928, 1.442695
  %v930 = vpow.pop %v929
  %v931 = vadd.f32 %v930, 1.0
  %v932 = vrcp.pop %v931
  %v933 = vmul.f32 1.0, %v932
  %v934 = vtanh.pop %v923
  %v935 = vmul.f32 %v933, %v796
  %937 = vrot.lane.b32.xlu0 %v934, 64
  %v938 = vpop.permute.xlu0 %937
  %v940 = vmul.f32 %v933, %v938
  %942 = vrot.lane.b32.xlu0 %v940, 32
  %v943 = vpop.permute.xlu0 %942
  %v945 = vadd.f32 %v935, %v943
  %v946 = vtanh.pop %v945
  %948 = vrot.lane.b32.xlu0 %v946, 64
  %v949 = vpop.permute.xlu0 %948
  %v951 = vmul.f32 %v933, %v949
  %v952 = vpack.c.bf16 %v874, %v874
  %954 = vrot.lane.b32.xlu0 %v952, 32
  %v955 = vpop.permute.xlu0 %954
  %v957 = vsel %vm80, %v955, 0
  %959 = vmatprep.subr.bf16.mxu0 0
  %960 = vmatpush1.bf16.msra.mxu0 %v180
  %961 = vmatprep.subr.bf16.mxu0 0
  %962 = vmatpush1.bf16.msra.mxu0 %v181
  %963 = vmatprep.subr.bf16.mxu0 0
  %964 = vmatpush1.bf16.msra.mxu0 0
  %965 = vmatprep.subr.bf16.mxu0 0
  %966 = vmatpush1.bf16.msra.mxu0 0
  %967 = vmatprep.subr.bf16.mxu0 0
  %968 = vmatpush1.bf16.msra.mxu0 0
  %969 = vmatprep.subr.bf16.mxu0 0
  %970 = vmatpush1.bf16.msra.mxu0 0
  %971 = vmatprep.subr.bf16.mxu0 0
  %972 = vmatpush1.bf16.msra.mxu0 0
  %973 = vmatprep.subr.bf16.mxu0 0
  %974 = vmatpush1.bf16.msra.mxu0 0
  %975 = vmatprep.subr.bf16.mxu0 0
  %976 = vmatpush1.bf16.msra.mxu0 0
  %977 = vmatprep.subr.bf16.mxu0 0
  %978 = vmatpush1.bf16.msra.mxu0 0
  %979 = vmatprep.subr.bf16.mxu0 0
  %980 = vmatpush1.bf16.msra.mxu0 0
  %981 = vmatprep.subr.bf16.mxu0 0
  %982 = vmatpush1.bf16.msra.mxu0 0
  %983 = vmatprep.subr.bf16.mxu0 0
  %984 = vmatpush1.bf16.msra.mxu0 0
  %985 = vmatprep.subr.bf16.mxu0 0
  %986 = vmatpush1.bf16.msra.mxu0 0
  %987 = vmatprep.subr.bf16.mxu0 0
  %988 = vmatpush1.bf16.msra.mxu0 0
  %989 = vmatprep.subr.bf16.mxu0 0
  %990 = vmatpush1.bf16.msra.mxu0 0
  %991 = vmatprep.mubr.bf16.mxu0 0
  %992 = vmatmul.mubr.bf16.gmra.mrb[0].mxu0 %v957
  %v993 = vpop.f32.mrb[0].mxu0
  %v994 = vadd.f32 0.0, %v993
  %v995 = vpop.f32.mrb[0].mxu0
  %v996 = vpop.f32.mrb[0].mxu0
  %v997 = vpop.f32.mrb[0].mxu0
  %998 = vdwg.mxu0
  %v999 = vadd.f32 %v147, %v994
  %v1000 = vxor.u32 %v999, 2147483648
  %v1001 = vmul.f32 %v1000, 1.442695
  %v1002 = vpow.pop %v1001
  %v1003 = vadd.f32 %v1002, 1.0
  %v1004 = vrcp.pop %v1003
  %v1005 = vmul.f32 1.0, %v1004
  %v1006 = vtanh.pop %v999
  %v1007 = vmul.f32 %v1005, %v868
  %1009 = vrot.lane.b32.xlu0 %v1006, 64
  %v1010 = vpop.permute.xlu0 %1009
  %v1012 = vmul.f32 %v1005, %v1010
  %1014 = vrot.lane.b32.xlu0 %v1012, 32
  %v1015 = vpop.permute.xlu0 %1014
  %v1017 = vadd.f32 %v1007, %v1015
  %v1018 = vtanh.pop %v1017
  %1020 = vrot.lane.b32.xlu0 %v1018, 64
  %v1021 = vpop.permute.xlu0 %1020
  %v1023 = vmul.f32 %v1005, %v1021
  %1025 = vrot.lane.b32.xlu0 %v1023, 32
  %v1026 = vpop.permute.xlu0 %1025
  %1029 = vrot.lane.b32.xlu0 %v951, 64
  %v1030 = vpop.permute.xlu0 %1029
  %v1032 = vsel %vm80, %v1026, %v1030
  %v1033 = vpack.c.bf16 %v1032, %v1032
  %v1035 = vsel %vm288, %v1033, 0
  %1037 = vmatprep.subr.bf16.mxu0 0
  %1038 = vmatpush1.bf16.msra.mxu0 %v280
  %1039 = vmatprep.subr.bf16.mxu0 0
  %1040 = vmatpush1.bf16.msra.mxu0 %v281
  %1041 = vmatprep.subr.bf16.mxu0 0
  %1042 = vmatpush1.bf16.msra.mxu0 %v282
  %1043 = vmatprep.subr.bf16.mxu0 0
  %1044 = vmatpush1.bf16.msra.mxu0 %v283
  %1045 = vmatprep.subr.bf16.mxu0 0
  %1046 = vmatpush1.bf16.msra.mxu0 0
  %1047 = vmatprep.subr.bf16.mxu0 0
  %1048 = vmatpush1.bf16.msra.mxu0 0
  %1049 = vmatprep.subr.bf16.mxu0 0
  %1050 = vmatpush1.bf16.msra.mxu0 0
  %1051 = vmatprep.subr.bf16.mxu0 0
  %1052 = vmatpush1.bf16.msra.mxu0 0
  %1053 = vmatprep.subr.bf16.mxu0 0
  %1054 = vmatpush1.bf16.msra.mxu0 0
  %1055 = vmatprep.subr.bf16.mxu0 0
  %1056 = vmatpush1.bf16.msra.mxu0 0
  %1057 = vmatprep.subr.bf16.mxu0 0
  %1058 = vmatpush1.bf16.msra.mxu0 0
  %1059 = vmatprep.subr.bf16.mxu0 0
  %1060 = vmatpush1.bf16.msra.mxu0 0
  %1061 = vmatprep.subr.bf16.mxu0 0
  %1062 = vmatpush1.bf16.msra.mxu0 0
  %1063 = vmatprep.subr.bf16.mxu0 0
  %1064 = vmatpush1.bf16.msra.mxu0 0
  %1065 = vmatprep.subr.bf16.mxu0 0
  %1066 = vmatpush1.bf16.msra.mxu0 0
  %1067 = vmatprep.subr.bf16.mxu0 0
  %1068 = vmatpush1.bf16.msra.mxu0 0
  %1069 = vmatprep.mubr.bf16.mxu0 0
  %1070 = vmatmul.mubr.bf16.gmra.mrb[0].mxu0 %v1035
  %v1071 = vpop.f32.mrb[0].mxu0
  %v1072 = vadd.f32 %v262, %v1071
  %v1073 = vpop.f32.mrb[0].mxu0
  %v1074 = vpop.f32.mrb[0].mxu0
  %v1075 = vpop.f32.mrb[0].mxu0
  %1076 = vdwg.mxu0
  %v1077 = vxor.u32 %v1072, 2147483648
  %v1078 = vmul.f32 %v1077, 1.442695
  %v1079 = vpow.pop %v1078
  %v1080 = vadd.f32 %v1079, 1.0
  %v1081 = vrcp.pop %v1080
  %v1082 = vmul.f32 1.0, %v1081
  %v1083 = vtanh.pop %v1072
  %v1084 = vmul.f32 %v1082, %v945
  %1086 = vrot.lane.b32.xlu0 %v1083, 64
  %v1087 = vpop.permute.xlu0 %1086
  %v1089 = vmul.f32 %v1082, %v1087
  %1091 = vrot.lane.b32.xlu0 %v1089, 32
  %v1092 = vpop.permute.xlu0 %1091
  %v1094 = vadd.f32 %v1084, %v1092
  %v1095 = vtanh.pop %v1094
  %1097 = vrot.lane.b32.xlu0 %v1095, 64
  %v1098 = vpop.permute.xlu0 %1097
  %v1100 = vmul.f32 %v1082, %v1098
  %v1101 = vpack.c.bf16 %v1023, %v1023
  %1103 = vrot.lane.b32.xlu0 %v1101, 32
  %v1104 = vpop.permute.xlu0 %1103
  %v1106 = vsel %vm80, %v1104, 0
  %1108 = vmatprep.subr.bf16.mxu0 0
  %1109 = vmatpush1.bf16.msra.mxu0 %v180
  %1110 = vmatprep.subr.bf16.mxu0 0
  %1111 = vmatpush1.bf16.msra.mxu0 %v181
  %1112 = vmatprep.subr.bf16.mxu0 0
  %1113 = vmatpush1.bf16.msra.mxu0 0
  %1114 = vmatprep.subr.bf16.mxu0 0
  %1115 = vmatpush1.bf16.msra.mxu0 0
  %1116 = vmatprep.subr.bf16.mxu0 0
  %1117 = vmatpush1.bf16.msra.mxu0 0
  %1118 = vmatprep.subr.bf16.mxu0 0
  %1119 = vmatpush1.bf16.msra.mxu0 0
  %1120 = vmatprep.subr.bf16.mxu0 0
  %1121 = vmatpush1.bf16.msra.mxu0 0
  %1122 = vmatprep.subr.bf16.mxu0 0
  %1123 = vmatpush1.bf16.msra.mxu0 0
  %1124 = vmatprep.subr.bf16.mxu0 0
  %1125 = vmatpush1.bf16.msra.mxu0 0
  %1126 = vmatprep.subr.bf16.mxu0 0
  %1127 = vmatpush1.bf16.msra.mxu0 0
  %1128 = vmatprep.subr.bf16.mxu0 0
  %1129 = vmatpush1.bf16.msra.mxu0 0
  %1130 = vmatprep.subr.bf16.mxu0 0
  %1131 = vmatpush1.bf16.msra.mxu0 0
  %1132 = vmatprep.subr.bf16.mxu0 0
  %1133 = vmatpush1.bf16.msra.mxu0 0
  %1134 = vmatprep.subr.bf16.mxu0 0
  %1135 = vmatpush1.bf16.msra.mxu0 0
  %1136 = vmatprep.subr.bf16.mxu0 0
  %1137 = vmatpush1.bf16.msra.mxu0 0
  %1138 = vmatprep.subr.bf16.mxu0 0
  %1139 = vmatpush1.bf16.msra.mxu0 0
  %1140 = vmatprep.mubr.bf16.mxu0 0
  %1141 = vmatmul.mubr.bf16.gmra.mrb[0].mxu0 %v1106
  %v1142 = vpop.f32.mrb[0].mxu0
  %v1143 = vadd.f32 0.0, %v1142
  %v1144 = vpop.f32.mrb[0].mxu0
  %v1145 = vpop.f32.mrb[0].mxu0
  %v1146 = vpop.f32.mrb[0].mxu0
  %1147 = vdwg.mxu0
  %v1148 = vadd.f32 %v152, %v1143
  %v1149 = vxor.u32 %v1148, 2147483648
  %v1150 = vmul.f32 %v1149, 1.442695
  %v1151 = vpow.pop %v1150
  %v1152 = vadd.f32 %v1151, 1.0
  %v1153 = vrcp.pop %v1152
  %v1154 = vmul.f32 1.0, %v1153
  %v1155 = vtanh.pop %v1148
  %v1156 = vmul.f32 %v1154, %v1017
  %1158 = vrot.lane.b32.xlu0 %v1155, 64
  %v1159 = vpop.permute.xlu0 %1158
  %v1161 = vmul.f32 %v1154, %v1159
  %1163 = vrot.lane.b32.xlu0 %v1161, 32
  %v1164 = vpop.permute.xlu0 %1163
  %v1166 = vadd.f32 %v1156, %v1164
  %v1167 = vtanh.pop %v1166
  %1169 = vrot.lane.b32.xlu0 %v1167, 64
  %v1170 = vpop.permute.xlu0 %1169
  %v1172 = vmul.f32 %v1154, %v1170
  %1174 = vrot.lane.b32.xlu0 %v1172, 32
  %v1175 = vpop.permute.xlu0 %1174
  %1178 = vrot.lane.b32.xlu0 %v1100, 64
  %v1179 = vpop.permute.xlu0 %1178
  %v1181 = vsel %vm80, %v1175, %v1179
  %v1182 = vpack.c.bf16 %v1181, %v1181
  %v1184 = vsel %vm288, %v1182, 0
  %1186 = vmatprep.subr.bf16.mxu0 0
  %1187 = vmatpush1.bf16.msra.mxu0 %v280
  %1188 = vmatprep.subr.bf16.mxu0 0
  %1189 = vmatpush1.bf16.msra.mxu0 %v281
  %1190 = vmatprep.subr.bf16.mxu0 0
  %1191 = vmatpush1.bf16.msra.mxu0 %v282
  %1192 = vmatprep.subr.bf16.mxu0 0
  %1193 = vmatpush1.bf16.msra.mxu0 %v283
  %1194 = vmatprep.subr.bf16.mxu0 0
  %1195 = vmatpush1.bf16.msra.mxu0 0
  %1196 = vmatprep.subr.bf16.mxu0 0
  %1197 = vmatpush1.bf16.msra.mxu0 0
  %1198 = vmatprep.subr.bf16.mxu0 0
  %1199 = vmatpush1.bf16.msra.mxu0 0
  %1200 = vmatprep.subr.bf16.mxu0 0
  %1201 = vmatpush1.bf16.msra.mxu0 0
  %1202 = vmatprep.subr.bf16.mxu0 0
  %1203 = vmatpush1.bf16.msra.mxu0 0
  %1204 = vmatprep.subr.bf16.mxu0 0
  %1205 = vmatpush1.bf16.msra.mxu0 0
  %1206 = vmatprep.subr.bf16.mxu0 0
  %1207 = vmatpush1.bf16.msra.mxu0 0
  %1208 = vmatprep.subr.bf16.mxu0 0
  %1209 = vmatpush1.bf16.msra.mxu0 0
  %1210 = vmatprep.subr.bf16.mxu0 0
  %1211 = vmatpush1.bf16.msra.mxu0 0
  %1212 = vmatprep.subr.bf16.mxu0 0
  %1213 = vmatpush1.bf16.msra.mxu0 0
  %1214 = vmatprep.subr.bf16.mxu0 0
  %1215 = vmatpush1.bf16.msra.mxu0 0
  %1216 = vmatprep.subr.bf16.mxu0 0
  %1217 = vmatpush1.bf16.msra.mxu0 0
  %1218 = vmatprep.mubr.bf16.mxu0 0
  %1219 = vmatmul.mubr.bf16.gmra.mrb[0].mxu0 %v1184
  %v1220 = vpop.f32.mrb[0].mxu0
  %v1221 = vadd.f32 %v262, %v1220
  %v1222 = vpop.f32.mrb[0].mxu0
  %v1223 = vpop.f32.mrb[0].mxu0
  %v1224 = vpop.f32.mrb[0].mxu0
  %1225 = vdwg.mxu0
  %v1226 = vxor.u32 %v1221, 2147483648
  %v1227 = vmul.f32 %v1226, 1.442695
  %v1228 = vpow.pop %v1227
  %v1229 = vadd.f32 %v1228, 1.0
  %v1230 = vrcp.pop %v1229
  %v1231 = vmul.f32 1.0, %v1230
  %v1232 = vtanh.pop %v1221
  %v1233 = vmul.f32 %v1231, %v1094
  %1235 = vrot.lane.b32.xlu0 %v1232, 64
  %v1236 = vpop.permute.xlu0 %1235
  %v1238 = vmul.f32 %v1231, %v1236
  %1240 = vrot.lane.b32.xlu0 %v1238, 32
  %v1241 = vpop.permute.xlu0 %1240
  %v1243 = vadd.f32 %v1233, %v1241
  %v1244 = vtanh.pop %v1243
  %1246 = vrot.lane.b32.xlu0 %v1244, 64
  %v1247 = vpop.permute.xlu0 %1246
  %v1249 = vmul.f32 %v1231, %v1247
  %v1250 = vpack.c.bf16 %v1172, %v1172
  %1252 = vrot.lane.b32.xlu0 %v1250, 32
  %v1253 = vpop.permute.xlu0 %1252
  %v1255 = vsel %vm80, %v1253, 0
  %1257 = vmatprep.subr.bf16.mxu0 0
  %1258 = vmatpush1.bf16.msra.mxu0 %v180
  %1259 = vmatprep.subr.bf16.mxu0 0
  %1260 = vmatpush1.bf16.msra.mxu0 %v181
  %1261 = vmatprep.subr.bf16.mxu0 0
  %1262 = vmatpush1.bf16.msra.mxu0 0
  %1263 = vmatprep.subr.bf16.mxu0 0
  %1264 = vmatpush1.bf16.msra.mxu0 0
  %1265 = vmatprep.subr.bf16.mxu0 0
  %1266 = vmatpush1.bf16.msra.mxu0 0
  %1267 = vmatprep.subr.bf16.mxu0 0
  %1268 = vmatpush1.bf16.msra.mxu0 0
  %1269 = vmatprep.subr.bf16.mxu0 0
  %1270 = vmatpush1.bf16.msra.mxu0 0
  %1271 = vmatprep.subr.bf16.mxu0 0
  %1272 = vmatpush1.bf16.msra.mxu0 0
  %1273 = vmatprep.subr.bf16.mxu0 0
  %1274 = vmatpush1.bf16.msra.mxu0 0
  %1275 = vmatprep.subr.bf16.mxu0 0
  %1276 = vmatpush1.bf16.msra.mxu0 0
  %1277 = vmatprep.subr.bf16.mxu0 0
  %1278 = vmatpush1.bf16.msra.mxu0 0
  %1279 = vmatprep.subr.bf16.mxu0 0
  %1280 = vmatpush1.bf16.msra.mxu0 0
  %1281 = vmatprep.subr.bf16.mxu0 0
  %1282 = vmatpush1.bf16.msra.mxu0 0
  %1283 = vmatprep.subr.bf16.mxu0 0
  %1284 = vmatpush1.bf16.msra.mxu0 0
  %1285 = vmatprep.subr.bf16.mxu0 0
  %1286 = vmatpush1.bf16.msra.mxu0 0
  %1287 = vmatprep.subr.bf16.mxu0 0
  %1288 = vmatpush1.bf16.msra.mxu0 0
  %1289 = vmatprep.mubr.bf16.mxu0 0
  %1290 = vmatmul.mubr.bf16.gmra.mrb[0].mxu0 %v1255
  %v1291 = vpop.f32.mrb[0].mxu0
  %v1292 = vadd.f32 0.0, %v1291
  %v1293 = vpop.f32.mrb[0].mxu0
  %v1294 = vpop.f32.mrb[0].mxu0
  %v1295 = vpop.f32.mrb[0].mxu0
  %1296 = vdwg.mxu0
  %v1297 = vadd.f32 %v155, %v1292
  %v1298 = vxor.u32 %v1297, 2147483648
  %v1299 = vmul.f32 %v1298, 1.442695
  %v1300 = vpow.pop %v1299
  %v1301 = vadd.f32 %v1300, 1.0
  %v1302 = vrcp.pop %v1301
  %v1303 = vmul.f32 1.0, %v1302
  %v1304 = vtanh.pop %v1297
  %v1305 = vmul.f32 %v1303, %v1166
  %1307 = vrot.lane.b32.xlu0 %v1304, 64
  %v1308 = vpop.permute.xlu0 %1307
  %v1310 = vmul.f32 %v1303, %v1308
  %1312 = vrot.lane.b32.xlu0 %v1310, 32
  %v1313 = vpop.permute.xlu0 %1312
  %v1315 = vadd.f32 %v1305, %v1313
  %v1316 = vtanh.pop %v1315
  %1318 = vrot.lane.b32.xlu0 %v1316, 64
  %v1319 = vpop.permute.xlu0 %1318
  %v1321 = vmul.f32 %v1303, %v1319
  %1323 = vrot.lane.b32.xlu0 %v1321, 32
  %v1324 = vpop.permute.xlu0 %1323
  %1327 = vrot.lane.b32.xlu0 %v1249, 64
  %v1328 = vpop.permute.xlu0 %1327
  %v1330 = vsel %vm80, %v1324, %v1328
  %v1331 = vpack.c.bf16 %v1330, %v1330
  %v1333 = vsel %vm288, %v1331, 0
  %1335 = vmatprep.subr.bf16.mxu0 0
  %1336 = vmatpush1.bf16.msra.mxu0 %v280
  %1337 = vmatprep.subr.bf16.mxu0 0
  %1338 = vmatpush1.bf16.msra.mxu0 %v281
  %1339 = vmatprep.subr.bf16.mxu0 0
  %1340 = vmatpush1.bf16.msra.mxu0 %v282
  %1341 = vmatprep.subr.bf16.mxu0 0
  %1342 = vmatpush1.bf16.msra.mxu0 %v283
  %1343 = vmatprep.subr.bf16.mxu0 0
  %1344 = vmatpush1.bf16.msra.mxu0 0
  %1345 = vmatprep.subr.bf16.mxu0 0
  %1346 = vmatpush1.bf16.msra.mxu0 0
  %1347 = vmatprep.subr.bf16.mxu0 0
  %1348 = vmatpush1.bf16.msra.mxu0 0
  %1349 = vmatprep.subr.bf16.mxu0 0
  %1350 = vmatpush1.bf16.msra.mxu0 0
  %1351 = vmatprep.subr.bf16.mxu0 0
  %1352 = vmatpush1.bf16.msra.mxu0 0
  %1353 = vmatprep.subr.bf16.mxu0 0
  %1354 = vmatpush1.bf16.msra.mxu0 0
  %1355 = vmatprep.subr.bf16.mxu0 0
  %1356 = vmatpush1.bf16.msra.mxu0 0
  %1357 = vmatprep.subr.bf16.mxu0 0
  %1358 = vmatpush1.bf16.msra.mxu0 0
  %1359 = vmatprep.subr.bf16.mxu0 0
  %1360 = vmatpush1.bf16.msra.mxu0 0
  %1361 = vmatprep.subr.bf16.mxu0 0
  %1362 = vmatpush1.bf16.msra.mxu0 0
  %1363 = vmatprep.subr.bf16.mxu0 0
  %1364 = vmatpush1.bf16.msra.mxu0 0
  %1365 = vmatprep.subr.bf16.mxu0 0
  %1366 = vmatpush1.bf16.msra.mxu0 0
  %1367 = vmatprep.mubr.bf16.mxu0 0
  %1368 = vmatmul.mubr.bf16.gmra.mrb[0].mxu0 %v1333
  %v1369 = vpop.f32.mrb[0].mxu0
  %v1370 = vadd.f32 %v262, %v1369
  %v1371 = vpop.f32.mrb[0].mxu0
  %v1372 = vpop.f32.mrb[0].mxu0
  %v1373 = vpop.f32.mrb[0].mxu0
  %1374 = vdwg.mxu0
  %v1375 = vxor.u32 %v1370, 2147483648
  %v1376 = vmul.f32 %v1375, 1.442695
  %v1377 = vpow.pop %v1376
  %v1378 = vadd.f32 %v1377, 1.0
  %v1379 = vrcp.pop %v1378
  %v1380 = vmul.f32 1.0, %v1379
  %v1381 = vtanh.pop %v1370
  %v1382 = vmul.f32 %v1380, %v1243
  %1384 = vrot.lane.b32.xlu0 %v1381, 64
  %v1385 = vpop.permute.xlu0 %1384
  %v1387 = vmul.f32 %v1380, %v1385
  %1389 = vrot.lane.b32.xlu0 %v1387, 32
  %v1390 = vpop.permute.xlu0 %1389
  %v1392 = vadd.f32 %v1382, %v1390
  %v1393 = vtanh.pop %v1392
  %1395 = vrot.lane.b32.xlu0 %v1393, 64
  %v1396 = vpop.permute.xlu0 %1395
  %v1398 = vmul.f32 %v1380, %v1396
  %v1399 = vld [vmem:[%s5] sm:$0xff]
  %v1400 = vld [vmem:[%s5 + $0x8] sm:$0xff]
  %v1401 = vld [vmem:[%s5 + $0x10] sm:$0xff]
  %v1402 = vld [vmem:[%s5 + $0x18] sm:$0xff]
  %v1403 = vld [vmem:[#allocation2] sm:$0x1]
  %v1405 = vlaneseq
  %v1406 = vshrl.u32 %v1405, 7
  %v1407 = vsub.s32 0, %v1406
  %v1408 = vrot.slane %v1403, %v1407
  %1411 = vrot.lane.b32.xlu0 %v1398, 32
  %v1412 = vpop.permute.xlu0 %1411
  %v1413 = vsel %vm80, %v1412, 0
  %1415 = vmatprep.subr.mxu0 0.0
  %1416 = vmatpush1.msra.mxu0 %v1399
  %1417 = vmatprep.subr.mxu0 0.0
  %1418 = vmatpush1.msra.mxu0 %v1400
  %1419 = vmatprep.subr.mxu0 0.0
  %1420 = vmatpush1.msra.mxu0 %v1401
  %1421 = vmatprep.subr.mxu0 0.0
  %1422 = vmatpush1.msra.mxu0 %v1402
  %1423 = vmatprep.subr.mxu0 0.0
  %1424 = vmatpush1.msra.mxu0 0.0
  %1425 = vmatprep.subr.mxu0 0.0
  %1426 = vmatpush1.msra.mxu0 0.0
  %1427 = vmatprep.subr.mxu0 0.0
  %1428 = vmatpush1.msra.mxu0 0.0
  %1429 = vmatprep.subr.mxu0 0.0
  %1430 = vmatpush1.msra.mxu0 0.0
  %1431 = vmatprep.subr.mxu0 0.0
  %1432 = vmatpush1.msra.mxu0 0.0
  %1433 = vmatprep.subr.mxu0 0.0
  %1434 = vmatpush1.msra.mxu0 0.0
  %1435 = vmatprep.subr.mxu0 0.0
  %1436 = vmatpush1.msra.mxu0 0.0
  %1437 = vmatprep.subr.mxu0 0.0
  %1438 = vmatpush1.msra.mxu0 0.0
  %1439 = vmatprep.subr.mxu0 0.0
  %1440 = vmatpush1.msra.mxu0 0.0
  %1441 = vmatprep.subr.mxu0 0.0
  %1442 = vmatpush1.msra.mxu0 0.0
  %1443 = vmatprep.subr.mxu0 0.0
  %1444 = vmatpush1.msra.mxu0 0.0
  %1445 = vmatprep.subr.mxu0 0.0
  %1446 = vmatpush1.msra.mxu0 0.0
  %1447 = vmatprep.subr.mxu0 0.0
  %1448 = vmatpush1.msra.mxu0 0.0
  %1449 = vmatprep.subr.mxu0 0.0
  %1450 = vmatpush1.msra.mxu0 0.0
  %1451 = vmatprep.subr.mxu0 0.0
  %1452 = vmatpush1.msra.mxu0 0.0
  %1453 = vmatprep.subr.mxu0 0.0
  %1454 = vmatpush1.msra.mxu0 0.0
  %1455 = vmatprep.subr.mxu0 0.0
  %1456 = vmatpush1.msra.mxu0 0.0
  %1457 = vmatprep.subr.mxu0 0.0
  %1458 = vmatpush1.msra.mxu0 0.0
  %1459 = vmatprep.subr.mxu0 0.0
  %1460 = vmatpush1.msra.mxu0 0.0
  %1461 = vmatprep.subr.mxu0 0.0
  %1462 = vmatpush1.msra.mxu0 0.0
  %1463 = vmatprep.subr.mxu0 0.0
  %1464 = vmatpush1.msra.mxu0 0.0
  %1465 = vmatprep.subr.mxu0 0.0
  %1466 = vmatpush1.msra.mxu0 0.0
  %1467 = vmatprep.subr.mxu0 0.0
  %1468 = vmatpush1.msra.mxu0 0.0
  %1469 = vmatprep.subr.mxu0 0.0
  %1470 = vmatpush1.msra.mxu0 0.0
  %1471 = vmatprep.subr.mxu0 0.0
  %1472 = vmatpush1.msra.mxu0 0.0
  %1473 = vmatprep.subr.mxu0 0.0
  %1474 = vmatpush1.msra.mxu0 0.0
  %1475 = vmatprep.subr.mxu0 0.0
  %1476 = vmatpush1.msra.mxu0 0.0
  %1477 = vmatprep.subr.mxu0 0.0
  %1478 = vmatpush1.msra.mxu0 0.0
  %1479 = vmatprep.mubr.f32.mxu0 0.0
  %1480 = vmatmul.mubr.f32.gmra.mrb[0].mxu0 %v1413
  %v1481 = vpop.f32.mrb[0].mxu0
  %v1482 = vadd.f32 %v1408, %v1481
  %v1483 = vpop.f32.mrb[0].mxu0
  %1484 = vdwg.mxu0
  %vm1485 = vcmask 1024
  %1486 = vst.msk [vmem:[%s7] sm:$0x3] %vm1485, %v1482
  // Predicated region
  $region30: #{lstm_model_forward.1} parent=0 // pred_check
    _
  $region31: #{lstm_model_forward.1} parent=0 // pred_check_branch
    %1488 = sbr.rel (0) target = $region33
  $region32: #{lstm_model_forward.1} parent=0 // pred_region
    _
  $region33: #{lstm_model_forward.1} parent=0 // pred_fallthru
    _
  // Predicated region
  $region34: #{lstm_model_forward.1} parent=0 // pred_check
    _
  $region35: #{lstm_model_forward.1} parent=0 // pred_check_branch
    %1490 = sbr.rel (0) target = $region37
  $region36: #{lstm_model_forward.1} parent=0 // pred_region
    _
  $region37: #{lstm_model_forward.1} parent=0 // pred_fallthru
    _

</llo_original>
